<compile_context>
chip_gen: v7x
topology: tpu7x:2x2x1
jax: 0.10.0
libtpu: 0.0.40
codegen_flags: <defaults>
</compile_context>

<pallas_src>
import functools

import jax
import jax.numpy as jnp
from jax.experimental import pallas as pl
from jax.experimental.pallas import tpu as pltpu

EPS = 1e-4  # IntensityBatchNorm eps


def _round_up(x: int, m: int) -> int:
    return ((x + m - 1) // m) * m


def _default_compute_dtype():
    # bf16 matmuls on v6e/v7x (bf16-native 256-wide MXU, halves weight bytes);
    # keep f32 on v5e and older (128-wide MXU, no bf16 VPU, overhead-bound).
    try:
        kind = jax.devices()[0].device_kind.lower()
    except Exception:
        return jnp.bfloat16
    for old in ("v2", "v3", "v4", "v5"):
        if old in kind:
            return jnp.float32
    return jnp.bfloat16


def _fuser_kernel(x0_ref, x1_ref, w1a_ref, w1b_ref, b1_ref,
                  w2_ref, b2_ref, w3_ref, b3_ref, o_ref):
    """x0 @ w1a + x1 @ w1b (+b1) -> ReLU -> @w2 (+b2) -> ReLU -> @w3 (+b3).

    The IntensityBatchNorm scale is pre-folded into w1a/w1b by the wrapper.
    """
    cd = w1a_ref.dtype                       # compute dtype (bf16 or f32)
    x0 = x0_ref[...].astype(cd)
    x1 = x1_ref[...].astype(cd)

    h1 = (jnp.dot(x0, w1a_ref[...], preferred_element_type=jnp.float32)
          + jnp.dot(x1, w1b_ref[...], preferred_element_type=jnp.float32)
          + b1_ref[...])
    h1 = jnp.maximum(h1, 0.0)

    h2 = jnp.dot(h1.astype(cd), w2_ref[...],
                 preferred_element_type=jnp.float32) + b2_ref[...]
    h2 = jnp.maximum(h2, 0.0)

    h3 = jnp.dot(h2.astype(cd), w3_ref[...],
                 preferred_element_type=jnp.float32) + b3_ref[...]
    o_ref[...] = h3.astype(o_ref.dtype)


def rot_feat_fuser_forward(feat_0, feat_1, params, *, batch_tile: int = 256,
                           compute_dtype=None, interpret: bool = False):
    """RotFeatFuser.forward (eval mode).

    feat_0, feat_1: [B, 3, num_feat_vec]
    params: w1[6n,6n] b1[6n] w2[6n,6n] b2[6n] w3[6n,3n] b3[3n] running_mean[n]
    returns [B, 3, num_feat_vec]

    Note: at tiny batches (B <~ 64) the pallas_call launch overhead dominates;
    in that regime just let XLA fuse the three dots instead.
    """
    if compute_dtype is None:
        compute_dtype = _default_compute_dtype()
    assert batch_tile % 8 == 0, "batch_tile must be a sublane multiple"

    B, three, nfv = feat_0.shape
    assert three == 3
    cin_half = 3 * nfv                      # per-stream flattened width
    chid = 6 * nfv
    cout = 3 * nfv
    chid_p = _round_up(chid, 128)           # lane-dense hidden width
    cout_p = _round_up(cout, 128)           # lane-dense output width

    w1, b1 = params["w1"], params["b1"]
    w2, b2 = params["w2"], params["b2"]
    w3, b3 = params["w3"], params["b3"]
    rm = params["running_mean"].reshape(-1)

    # ---- weight prep (tiny, runs once per call outside the kernel) ------
    # Concat layout per batch row is [f0[:,a,:], f1[:,a,:]] for a in 0..2, so
    # split w1's rows accordingly -> the kernel consumes the two raw streams
    # and no [B, 6n] concat is ever materialized in HBM.
    w1r = w1.astype(jnp.float32).reshape(3, 2 * nfv, chid)
    w1a = w1r[:, :nfv, :].reshape(cin_half, chid)
    w1b = w1r[:, nfv:, :].reshape(cin_half, chid)

    # IntensityBatchNorm (eval): x / (running_mean + eps).  Fold the per-feature
    # scale into w1's rows ((x*s) @ W == x @ (s[:,None]*W)); the same batchnorm
    # instance feeds both streams, tiled to the [axis0|axis1|axis2] flat layout.
    s = jnp.tile(1.0 / (rm.astype(jnp.float32) + EPS), 3)[:, None]   # (3n, 1)
    w1a = w1a * s
    w1b = w1b * s

    def pad2(a, rows, cols):
        return jnp.pad(a, ((0, rows - a.shape[0]), (0, cols - a.shape[1])))

    # Zero padding keeps padded hidden columns exactly 0 (ReLU(0+0)=0) and
    # padded output columns exactly 0 (sliced off below).
    w1a_p = pad2(w1a, cin_half, chid_p).astype(compute_dtype)
    w1b_p = pad2(w1b, cin_half, chid_p).astype(compute_dtype)
    w2_p = pad2(w2.astype(jnp.float32), chid_p, chid_p).astype(compute_dtype)
    w3_p = pad2(w3.astype(jnp.float32), chid_p, cout_p).astype(compute_dtype)
    b1_p = jnp.pad(b1.reshape(1, -1).astype(jnp.float32), ((0, 0), (0, chid_p - chid)))
    b2_p = jnp.pad(b2.reshape(1, -1).astype(jnp.float32), ((0, 0), (0, chid_p - chid)))
    b3_p = jnp.pad(b3.reshape(1, -1).astype(jnp.float32), ((0, 0), (0, cout_p - cout)))

    # ---- activations: feature-last, one stream each, batch padded --------
    x0 = feat_0.reshape(B, cin_half)
    x1 = feat_1.reshape(B, cin_half)
    batch_tile = max(8, min(batch_tile, _round_up(B, 8)))   # don't compute on pure padding
    b_pad = _round_up(B, batch_tile)
    if b_pad != B:
        x0 = jnp.pad(x0, ((0, b_pad - B), (0, 0)))
        x1 = jnp.pad(x1, ((0, b_pad - B), (0, 0)))

    grid = (b_pad // batch_tile,)
    act_spec = pl.BlockSpec((batch_tile, cin_half), lambda i: (i, 0))

    def resident(shape):                     # same block every step -> stays in VMEM
        return pl.BlockSpec(shape, lambda i: (0, 0))

    itemsize = jnp.dtype(feat_0.dtype).itemsize
    flops = 2 * b_pad * (2 * cin_half * chid_p + chid_p * chid_p + chid_p * cout_p)
    bytes_accessed = (
        2 * b_pad * cin_half * itemsize          # x0, x1 in
        + b_pad * cout_p * itemsize              # out
        + sum(int(a.size) * jnp.dtype(a.dtype).itemsize
              for a in (w1a_p, w1b_p, w2_p, w3_p, b1_p, b2_p, b3_p)))

    out_padded = pl.pallas_call(
        _fuser_kernel,
        out_shape=jax.ShapeDtypeStruct((b_pad, cout_p), feat_0.dtype),
        grid=grid,
        in_specs=[
            act_spec,                            # x0 (streamed over batch)
            act_spec,                            # x1
            resident((cin_half, chid_p)),        # w1a (scale folded in)
            resident((cin_half, chid_p)),        # w1b (scale folded in)
            resident((1, chid_p)),               # b1
            resident((chid_p, chid_p)),          # w2
            resident((1, chid_p)),               # b2
            resident((chid_p, cout_p)),          # w3
            resident((1, cout_p)),               # b3
        ],
        out_specs=pl.BlockSpec((batch_tile, cout_p), lambda i: (i, 0)),
        compiler_params=pltpu.CompilerParams(
            dimension_semantics=("parallel",)),  # batch axis shards across TCs
        cost_estimate=pl.CostEstimate(
            flops=flops, transcendentals=0, bytes_accessed=bytes_accessed),
        interpret=interpret,
    )(x0, x1, w1a_p, w1b_p, b1_p, w2_p, b2_p, w3_p, b3_p)

    # Slice off batch + lane padding, restore [B, 3, num_feat_vec].
    return out_padded[:B, :cout].reshape(B, 3, nfv)


def init_params(key, num_feat_vec, dtype=jnp.float32):
    """nn.Linear-style init (uniform +-1/sqrt(fan_in)); weights stored [in, out]."""
    n = num_feat_vec
    dims = [(6 * n, 6 * n), (6 * n, 6 * n), (6 * n, 3 * n)]
    keys = jax.random.split(key, 7)
    params = {}
    for li, (fi, fo) in enumerate(dims):
        bound = fi ** -0.5
        params[f"w{li + 1}"] = jax.random.uniform(keys[2 * li], (fi, fo), dtype,
                                                  -bound, bound)
        params[f"b{li + 1}"] = jax.random.uniform(keys[2 * li + 1], (fo,), dtype,
                                                  -bound, bound)
    # IntensityBatchNorm buffer (ones at PyTorch init; random positive here so
    # the normalization path is actually exercised).
    params["running_mean"] = jax.random.uniform(keys[6], (n,), dtype, 0.5, 1.5)
    return params


def _reference_forward(feat_0, feat_1, params):
    """Pure-JAX reference matching the PyTorch module (eval mode)."""
    n = feat_0.shape[-1]
    d = params["running_mean"].reshape(1, 1, n) + EPS
    f0, f1 = feat_0 / d, feat_1 / d
    x = jnp.concatenate([f0, f1], axis=-1).reshape(feat_0.shape[0], -1)
    h = jnp.maximum(x @ params["w1"] + params["b1"], 0.0)
    h = jnp.maximum(h @ params["w2"] + params["b2"], 0.0)
    out = h @ params["w3"] + params["b3"]
    return out.reshape(-1, 3, n)


if __name__ == "__main__":
    num_feat_vec = 8
    batch = 300   # deliberately NOT a multiple of the 256-row batch tile

    key = jax.random.PRNGKey(0)
    k0, k1, kp = jax.random.split(key, 3)
    feat_0 = jax.random.normal(k0, (batch, 3, num_feat_vec), jnp.float32)
    feat_1 = jax.random.normal(k1, (batch, 3, num_feat_vec), jnp.float32)
    params = init_params(kp, num_feat_vec)

    ref = _reference_forward(feat_0, feat_1, params)

    # f32-MXU path: tight-ish correctness check.
    fwd_f32 = jax.jit(functools.partial(rot_feat_fuser_forward,
                                        compute_dtype=jnp.float32))
    out_f32 = jax.block_until_ready(fwd_f32(feat_0, feat_1, params))
    assert out_f32.shape == (batch, 3, num_feat_vec), out_f32.shape
    assert jnp.allclose(out_f32, ref, atol=1e-2, rtol=2e-2), (
        "f32 mismatch, max abs err = %e" % float(jnp.max(jnp.abs(out_f32 - ref))))

    # bf16-MXU fast path (v6e/v7x recommendation): looser check.
    fwd_bf16 = jax.jit(functools.partial(rot_feat_fuser_forward,
                                         compute_dtype=jnp.bfloat16))
    out_bf16 = jax.block_until_ready(fwd_bf16(feat_0, feat_1, params))
    assert out_bf16.shape == (batch, 3, num_feat_vec), out_bf16.shape
    assert jnp.allclose(out_bf16, ref, atol=3e-2, rtol=5e-2), (
        "bf16 mismatch, max abs err = %e" % float(jnp.max(jnp.abs(out_bf16 - ref))))

    print("KERNEL_OK")
</pallas_src>

<mosaic_0001>
module attributes {stable_mosaic.version = 11 : i64} {
  func.func @_fuser_kernel(%arg0: i32, %arg1: memref<256x24xf32, #tpu.memory_space<vmem>>, %arg2: memref<256x24xf32, #tpu.memory_space<vmem>>, %arg3: memref<24x128xf32, #tpu.memory_space<vmem>>, %arg4: memref<24x128xf32, #tpu.memory_space<vmem>>, %arg5: memref<1x128xf32, #tpu.memory_space<vmem>>, %arg6: memref<128x128xf32, #tpu.memory_space<vmem>>, %arg7: memref<1x128xf32, #tpu.memory_space<vmem>>, %arg8: memref<128x128xf32, #tpu.memory_space<vmem>>, %arg9: memref<1x128xf32, #tpu.memory_space<vmem>>, %arg10: memref<256x128xf32, #tpu.memory_space<vmem>>) attributes {dimension_semantics = [#tpu.dimension_semantics<parallel>], iteration_bounds = array<i64: 2>, scalar_prefetch = 0 : i64, scratch_operands = 0 : i64, tpu.core_type = #tpu.core_type<tc>, window_params = [{transform_indices = @transform_0, window_bounds = array<i64: 256, 24>}, {transform_indices = @transform_1, window_bounds = array<i64: 256, 24>}, {pipeline_mode = #tpu.pipeline_mode<synchronous>, transform_indices = @transform_2, window_bounds = array<i64: 24, 128>}, {pipeline_mode = #tpu.pipeline_mode<synchronous>, transform_indices = @transform_3, window_bounds = array<i64: 24, 128>}, {pipeline_mode = #tpu.pipeline_mode<synchronous>, transform_indices = @transform_4, window_bounds = array<i64: 1, 128>}, {pipeline_mode = #tpu.pipeline_mode<synchronous>, transform_indices = @transform_5, window_bounds = array<i64: 128, 128>}, {pipeline_mode = #tpu.pipeline_mode<synchronous>, transform_indices = @transform_6, window_bounds = array<i64: 1, 128>}, {pipeline_mode = #tpu.pipeline_mode<synchronous>, transform_indices = @transform_7, window_bounds = array<i64: 128, 128>}, {pipeline_mode = #tpu.pipeline_mode<synchronous>, transform_indices = @transform_8, window_bounds = array<i64: 1, 128>}, {transform_indices = @transform_9, window_bounds = array<i64: 256, 128>}]} {
    %c0 = arith.constant 0 : index
    %c0_0 = arith.constant 0 : index
    %0 = vector.load %arg1[%c0, %c0_0] : memref<256x24xf32, #tpu.memory_space<vmem>>, vector<256x24xf32>
    %c0_1 = arith.constant 0 : index
    %c0_2 = arith.constant 0 : index
    %1 = vector.load %arg2[%c0_1, %c0_2] : memref<256x24xf32, #tpu.memory_space<vmem>>, vector<256x24xf32>
    %c0_3 = arith.constant 0 : index
    %c0_4 = arith.constant 0 : index
    %2 = vector.load %arg3[%c0_3, %c0_4] : memref<24x128xf32, #tpu.memory_space<vmem>>, vector<24x128xf32>
    %cst = arith.constant dense<0.000000e+00> : vector<256x128xf32>
    %3 = tpu.matmul %0, %2, %cst {dimension_numbers = #tpu.dot_dimension_numbers<[1], [0], [0], [1], [0, 0, 1, 1], [], []>} : vector<256x24xf32>, vector<24x128xf32>, vector<256x128xf32> -> vector<256x128xf32>
    %c0_5 = arith.constant 0 : index
    %c0_6 = arith.constant 0 : index
    %4 = vector.load %arg4[%c0_5, %c0_6] : memref<24x128xf32, #tpu.memory_space<vmem>>, vector<24x128xf32>
    %cst_7 = arith.constant dense<0.000000e+00> : vector<256x128xf32>
    %5 = tpu.matmul %1, %4, %cst_7 {dimension_numbers = #tpu.dot_dimension_numbers<[1], [0], [0], [1], [0, 0, 1, 1], [], []>} : vector<256x24xf32>, vector<24x128xf32>, vector<256x128xf32> -> vector<256x128xf32>
    %6 = arith.addf %3, %5 : vector<256x128xf32>
    %c0_8 = arith.constant 0 : index
    %c0_9 = arith.constant 0 : index
    %7 = vector.load %arg5[%c0_8, %c0_9] : memref<1x128xf32, #tpu.memory_space<vmem>>, vector<1x128xf32>
    %8 = vector.broadcast %7 : vector<1x128xf32> to vector<256x128xf32>
    %9 = arith.addf %6, %8 : vector<256x128xf32>
    %cst_10 = arith.constant 0.000000e+00 : f32
    %10 = vector.broadcast %cst_10 : f32 to vector<256x128xf32>
    %11 = arith.maximumf %9, %10 : vector<256x128xf32>
    %c0_11 = arith.constant 0 : index
    %c0_12 = arith.constant 0 : index
    %12 = vector.load %arg6[%c0_11, %c0_12] : memref<128x128xf32, #tpu.memory_space<vmem>>, vector<128x128xf32>
    %cst_13 = arith.constant dense<0.000000e+00> : vector<256x128xf32>
    %13 = tpu.matmul %11, %12, %cst_13 {dimension_numbers = #tpu.dot_dimension_numbers<[1], [0], [0], [1], [0, 0, 1, 1], [], []>} : vector<256x128xf32>, vector<128x128xf32>, vector<256x128xf32> -> vector<256x128xf32>
    %c0_14 = arith.constant 0 : index
    %c0_15 = arith.constant 0 : index
    %14 = vector.load %arg7[%c0_14, %c0_15] : memref<1x128xf32, #tpu.memory_space<vmem>>, vector<1x128xf32>
    %15 = vector.broadcast %14 : vector<1x128xf32> to vector<256x128xf32>
    %16 = arith.addf %13, %15 : vector<256x128xf32>
    %cst_16 = arith.constant 0.000000e+00 : f32
    %17 = vector.broadcast %cst_16 : f32 to vector<256x128xf32>
    %18 = arith.maximumf %16, %17 : vector<256x128xf32>
    %c0_17 = arith.constant 0 : index
    %c0_18 = arith.constant 0 : index
    %19 = vector.load %arg8[%c0_17, %c0_18] : memref<128x128xf32, #tpu.memory_space<vmem>>, vector<128x128xf32>
    %cst_19 = arith.constant dense<0.000000e+00> : vector<256x128xf32>
    %20 = tpu.matmul %18, %19, %cst_19 {dimension_numbers = #tpu.dot_dimension_numbers<[1], [0], [0], [1], [0, 0, 1, 1], [], []>} : vector<256x128xf32>, vector<128x128xf32>, vector<256x128xf32> -> vector<256x128xf32>
    %c0_20 = arith.constant 0 : index
    %c0_21 = arith.constant 0 : index
    %21 = vector.load %arg9[%c0_20, %c0_21] : memref<1x128xf32, #tpu.memory_space<vmem>>, vector<1x128xf32>
    %22 = vector.broadcast %21 : vector<1x128xf32> to vector<256x128xf32>
    %23 = arith.addf %20, %22 : vector<256x128xf32>
    %c0_22 = arith.constant 0 : index
    %c0_23 = arith.constant 0 : index
    %24 = vector.load %arg10[%c0_22, %c0_23] : memref<256x128xf32, #tpu.memory_space<vmem>>, vector<256x128xf32>
    tpu.vector_store %arg10[%c0_22, %c0_23], %23 {strides = array<i32>} : memref<256x128xf32, #tpu.memory_space<vmem>>, vector<256x128xf32>,
    return
  }
  func.func @transform_0(%arg0: i32) -> (i32, i32) {
    %c0_i32 = arith.constant 0 : i32
    %c0_i32_0 = arith.constant 0 : i32
    return %arg0, %c0_i32 : i32, i32
  }
  func.func @transform_1(%arg0: i32) -> (i32, i32) {
    %c0_i32 = arith.constant 0 : i32
    %c0_i32_0 = arith.constant 0 : i32
    return %arg0, %c0_i32 : i32, i32
  }
  func.func @transform_2(%arg0: i32) -> (i32, i32) {
    %c0_i32 = arith.constant 0 : i32
    %c0_i32_0 = arith.constant 0 : i32
    %c0_i32_1 = arith.constant 0 : i32
    return %c0_i32, %c0_i32_0 : i32, i32
  }
  func.func @transform_3(%arg0: i32) -> (i32, i32) {
    %c0_i32 = arith.constant 0 : i32
    %c0_i32_0 = arith.constant 0 : i32
    %c0_i32_1 = arith.constant 0 : i32
    return %c0_i32, %c0_i32_0 : i32, i32
  }
  func.func @transform_4(%arg0: i32) -> (i32, i32) {
    %c0_i32 = arith.constant 0 : i32
    %c0_i32_0 = arith.constant 0 : i32
    %c0_i32_1 = arith.constant 0 : i32
    return %c0_i32, %c0_i32_0 : i32, i32
  }
  func.func @transform_5(%arg0: i32) -> (i32, i32) {
    %c0_i32 = arith.constant 0 : i32
    %c0_i32_0 = arith.constant 0 : i32
    %c0_i32_1 = arith.constant 0 : i32
    return %c0_i32, %c0_i32_0 : i32, i32
  }
  func.func @transform_6(%arg0: i32) -> (i32, i32) {
    %c0_i32 = arith.constant 0 : i32
    %c0_i32_0 = arith.constant 0 : i32
    %c0_i32_1 = arith.constant 0 : i32
    return %c0_i32, %c0_i32_0 : i32, i32
  }
  func.func @transform_7(%arg0: i32) -> (i32, i32) {
    %c0_i32 = arith.constant 0 : i32
    %c0_i32_0 = arith.constant 0 : i32
    %c0_i32_1 = arith.constant 0 : i32
    return %c0_i32, %c0_i32_0 : i32, i32
  }
  func.func @transform_8(%arg0: i32) -> (i32, i32) {
    %c0_i32 = arith.constant 0 : i32
    %c0_i32_0 = arith.constant 0 : i32
    %c0_i32_1 = arith.constant 0 : i32
    return %c0_i32, %c0_i32_0 : i32, i32
  }
  func.func @transform_9(%arg0: i32) -> (i32, i32) {
    %c0_i32 = arith.constant 0 : i32
    %c0_i32_0 = arith.constant 0 : i32
    return %arg0, %c0_i32 : i32, i32
  }
}

</mosaic_0001>

<llo_original>
// kernel: tile.8
$region0: #{tile.8}
  #allocation0 [shape = 's32[1]{0}', space=sflag, size = 0x4, scoped, tag = 'scoped memory for tile.8']
  %s0 = inlined_call_operand.vmem [shape: f32[8], index: 0, kind: input, shape index: {}]
  %s1 = inlined_call_operand.vmem [shape: f32[3,8], index: 1, kind: output, shape index: {}]
  // Predicated region
  $region2: #{tile.8} parent=0 // pred_check
    _
  $region3: #{tile.8} parent=0 // pred_check_branch
    %3 = sbr.rel (0) target = $region5
  $region4: #{tile.8} parent=0 // pred_region
    _
  $region5: #{tile.8} parent=0 // pred_fallthru
    _
  %v4 = vld [vmem:[%s0] ss:$0 sm:$0xff]
  %5 = vst [vmem:[%s1] sm:$0xf] %v4

// kernel: mul.9
$region0: #{mul.9}
  %s0 = inlined_call_operand.vmem [shape: f32[3,8], index: 0, kind: input, shape index: {}]
  %s1 = inlined_call_operand.vmem [shape: f32[24], index: 1, kind: output, shape index: {}]
  $region1: #{mul.9} parent=0
    #allocation0 [shape = 'u8[4096]{0}', space=vmem, size = 0x1000, scoped, tag = 'scoped mem for output reshape']
    #allocation1 [shape = 'u8[4096]{0}', space=vmem, size = 0x1000, scoped, tag = 'scoped mem for input reshape']
    %s3 = sshllo.u32 0, 4
    %v4 = vld [vmem:[%s0] sm:%s3]
    %5 = vst [vmem:[#allocation1] sm:%s3] %v4
    %v6 = vld [vmem:[#allocation1] sm:$0x1]
    %vm7 = vcmask 64512
    %8 = vst.msk [vmem:[#allocation0] sm:$0x1] %vm7, %v6
    %s9 = scalar_lea.vmem [#allocation1], 2
    %v10 = vld [vmem:[%s9] sm:$0x1]
    %11 = vrot.lane.b32.xlu0 %v10, 16
    %v12 = vpop.permute.xlu0 %11
    %vm13 = vcmask 195712
    %14 = vst.msk [vmem:[#allocation0] sm:$0x1] %vm13, %v12
    %s15 = scalar_lea.vmem [#allocation1], 1
    %v16 = vld [vmem:[%s15] sm:$0x1]
    %17 = vrot.lane.b32.xlu0 %v16, 8
    %v18 = vpop.permute.xlu0 %17
    %vm19 = vcmask 130112
    %20 = vst.msk [vmem:[#allocation0] sm:$0x1] %vm19, %v18
    %s22 = sshllo.u32 0, 1
    %v24 = vld [vmem:[#allocation0] sm:%s22]
    %s25 = sshllo.u32 0, 1
    %26 = vst [vmem:[%s1] sm:%s25] %v24

// kernel: rot_feat_fuser_forward.1
$region0: #{rot_feat_fuser_forward.1}
  #allocation0 [shape = 'u32[]', space=smem, size = 0x4, offset = 0x4, fixed_abs, tag = 'smem constant byte address 0x4 - core index']
  #allocation1 [shape = 'u32[144,128]{1,0:T(1,128)}', space=vmem, size = 0x12000, scoped, tag = 'internal scratch']
  %s0 = inlined_call_operand.vmem [shape: f32[512,24], index: 0, kind: input, shape index: {}]
  %s1 = inlined_call_operand.vmem [shape: f32[512,24], index: 1, kind: input, shape index: {}]
  %s2 = inlined_call_operand.vmem [shape: f32[24,128], index: 2, kind: input, shape index: {}]
  %s3 = inlined_call_operand.vmem [shape: f32[24,128], index: 3, kind: input, shape index: {}]
  %s4 = inlined_call_operand.vmem [shape: f32[1,128], index: 4, kind: input, shape index: {}]
  %s5 = inlined_call_operand.vmem [shape: f32[128,128], index: 5, kind: input, shape index: {}]
  %s6 = inlined_call_operand.vmem [shape: f32[1,128], index: 6, kind: input, shape index: {}]
  %s7 = inlined_call_operand.vmem [shape: f32[128,128], index: 7, kind: input, shape index: {}]
  %s8 = inlined_call_operand.vmem [shape: f32[1,128], index: 8, kind: input, shape index: {}]
  %s9 = inlined_call_operand.vmem [shape: f32[512,128], index: 9, kind: output, shape index: {}]
  %s10 = sld [smem:[#allocation0]]
  $region69: #{rot_feat_fuser_forward.1} parent=0
    _
  %s12 = ssub.s32 1, %s10
  %s13 = scalar_select 0, %s12, %s10
  loop: start=0, step=1, limit=4
  $region2: #{rot_feat_fuser_forward.1} parent=0 // loop_pre_header
    _
  $region3: #{rot_feat_fuser_forward.1} parent=0 // loop_header
    %s15 = sphi 0, %s19
    %p16 = scmp.ge.s32.totalorder %s15, 4
    %s25 = sphi 0, %s27
    %s28 = sphi 0, %s25
    %s29 = sphi 0, %s28
    %s45 = sphi 0, %s29
    %s51 = sphi 0, %s53
    %s54 = sphi 0, %s51
    %s55 = sphi 0, %s54
    %s71 = sphi 0, %s55
    %s75 = sphi 0, %s75
    %s77 = sphi 0, %s75
    %s78 = sphi 0, %s77
    %s92 = sphi 0, %s78
    %s96 = sphi 0, %s96
    %s98 = sphi 0, %s96
    %s99 = sphi 0, %s98
    %s113 = sphi 0, %s99
    %s117 = sphi 0, %s117
    %s119 = sphi 0, %s117
    %s120 = sphi 0, %s119
    %s134 = sphi 0, %s120
    %s138 = sphi 0, %s138
    %s140 = sphi 0, %s138
    %s141 = sphi 0, %s140
    %s155 = sphi 0, %s141
    %s159 = sphi 0, %s159
    %s161 = sphi 0, %s159
    %s162 = sphi 0, %s161
    %s176 = sphi 0, %s162
    %s180 = sphi 0, %s180
    %s182 = sphi 0, %s180
    %s183 = sphi 0, %s182
    %s197 = sphi 0, %s183
    %s201 = sphi 0, %s201
    %s203 = sphi 0, %s201
    %s204 = sphi 0, %s203
    %s218 = sphi 0, %s204
    %s224 = sphi 0, %s226
    %s227 = sphi 0, %s224
    %s228 = sphi 0, %s227
    %s244 = sphi 0, %s228
  $region4: #{rot_feat_fuser_forward.1} parent=0 // loop_header_branch
    %18 = sbr.rel (%p16) target = $region8
  $region5: #{rot_feat_fuser_forward.1} parent=0 // loop_body
    %s20 = ssub.s32 %s15, 1
    %s21 = ssub.s32 %s15, 2
    %s22 = sadd.s32 %s15, 1
    %s23 = ssub.s32 %s15, %s22
    %p24 = scmp.eq.s32.totalorder %s23, 0
    %s26 = sadd.s32 %s25, 1
    %s27 = scalar_select %p24, %s25, %s26
    %p30 = pneg %p24
    %p31 = scmp.eq.s32.totalorder %s15, 1
    %p32 = por %p30, %p31
    %p33 = scmp.ne.s32.totalorder %s25, %s28
    %p34 = scmp.eq.s32.totalorder %s15, 0
    %p35 = por %p33, %p34
    %p36 = scmp.ne.s32.totalorder %s25, %s28
    %p37 = scmp.eq.s32.totalorder %s20, 1
    %p38 = por %p36, %p37
    %p39 = scmp.ne.s32.totalorder %s28, %s29
    %p40 = scmp.eq.s32.totalorder %s20, 0
    %p41 = por %p39, %p40
    %p42 = scmp.ne.s32.totalorder %s28, %s29
    %p43 = scmp.eq.s32.totalorder %s21, 1
    %p44 = por %p42, %p43
    %p46 = scmp.ne.s32.totalorder %s29, %s45
    %p47 = scmp.eq.s32.totalorder %s21, 0
    %p48 = por %p46, %p47
    %s49 = ssub.s32 %s15, %s22
    %p50 = scmp.eq.s32.totalorder %s49, 0
    %s52 = sadd.s32 %s51, 1
    %s53 = scalar_select %p50, %s51, %s52
    %p56 = pneg %p50
    %p57 = scmp.eq.s32.totalorder %s15, 1
    %p58 = por %p56, %p57
    %p59 = scmp.ne.s32.totalorder %s51, %s54
    %p60 = scmp.eq.s32.totalorder %s15, 0
    %p61 = por %p59, %p60
    %p62 = scmp.ne.s32.totalorder %s51, %s54
    %p63 = scmp.eq.s32.totalorder %s20, 1
    %p64 = por %p62, %p63
    %p65 = scmp.ne.s32.totalorder %s54, %s55
    %p66 = scmp.eq.s32.totalorder %s20, 0
    %p67 = por %p65, %p66
    %p68 = scmp.ne.s32.totalorder %s54, %s55
    %p69 = scmp.eq.s32.totalorder %s21, 1
    %p70 = por %p68, %p69
    %p72 = scmp.ne.s32.totalorder %s55, %s71
    %p73 = scmp.eq.s32.totalorder %s21, 0
    %p74 = por %p72, %p73
    %s76 = sadd.s32 %s75, 1
    %p79 = scmp.eq.s32.totalorder %s15, 1
    %p80 = scmp.ne.s32.totalorder %s75, %s77
    %p81 = scmp.eq.s32.totalorder %s15, 0
    %p82 = por %p80, %p81
    %p83 = scmp.ne.s32.totalorder %s75, %s77
    %p84 = scmp.eq.s32.totalorder %s20, 1
    %p85 = por %p83, %p84
    %p86 = scmp.ne.s32.totalorder %s77, %s78
    %p87 = scmp.eq.s32.totalorder %s20, 0
    %p88 = por %p86, %p87
    %p89 = scmp.ne.s32.totalorder %s77, %s78
    %p90 = scmp.eq.s32.totalorder %s21, 1
    %p91 = por %p89, %p90
    %p93 = scmp.ne.s32.totalorder %s78, %s92
    %p94 = scmp.eq.s32.totalorder %s21, 0
    %p95 = por %p93, %p94
    %s97 = sadd.s32 %s96, 1
    %p100 = scmp.eq.s32.totalorder %s15, 1
    %p101 = scmp.ne.s32.totalorder %s96, %s98
    %p102 = scmp.eq.s32.totalorder %s15, 0
    %p103 = por %p101, %p102
    %p104 = scmp.ne.s32.totalorder %s96, %s98
    %p105 = scmp.eq.s32.totalorder %s20, 1
    %p106 = por %p104, %p105
    %p107 = scmp.ne.s32.totalorder %s98, %s99
    %p108 = scmp.eq.s32.totalorder %s20, 0
    %p109 = por %p107, %p108
    %p110 = scmp.ne.s32.totalorder %s98, %s99
    %p111 = scmp.eq.s32.totalorder %s21, 1
    %p112 = por %p110, %p111
    %p114 = scmp.ne.s32.totalorder %s99, %s113
    %p115 = scmp.eq.s32.totalorder %s21, 0
    %p116 = por %p114, %p115
    %s118 = sadd.s32 %s117, 1
    %p121 = scmp.eq.s32.totalorder %s15, 1
    %p122 = scmp.ne.s32.totalorder %s117, %s119
    %p123 = scmp.eq.s32.totalorder %s15, 0
    %p124 = por %p122, %p123
    %p125 = scmp.ne.s32.totalorder %s117, %s119
    %p126 = scmp.eq.s32.totalorder %s20, 1
    %p127 = por %p125, %p126
    %p128 = scmp.ne.s32.totalorder %s119, %s120
    %p129 = scmp.eq.s32.totalorder %s20, 0
    %p130 = por %p128, %p129
    %p131 = scmp.ne.s32.totalorder %s119, %s120
    %p132 = scmp.eq.s32.totalorder %s21, 1
    %p133 = por %p131, %p132
    %p135 = scmp.ne.s32.totalorder %s120, %s134
    %p136 = scmp.eq.s32.totalorder %s21, 0
    %p137 = por %p135, %p136
    %s139 = sadd.s32 %s138, 1
    %p142 = scmp.eq.s32.totalorder %s15, 1
    %p143 = scmp.ne.s32.totalorder %s138, %s140
    %p144 = scmp.eq.s32.totalorder %s15, 0
    %p145 = por %p143, %p144
    %p146 = scmp.ne.s32.totalorder %s138, %s140
    %p147 = scmp.eq.s32.totalorder %s20, 1
    %p148 = por %p146, %p147
    %p149 = scmp.ne.s32.totalorder %s140, %s141
    %p150 = scmp.eq.s32.totalorder %s20, 0
    %p151 = por %p149, %p150
    %p152 = scmp.ne.s32.totalorder %s140, %s141
    %p153 = scmp.eq.s32.totalorder %s21, 1
    %p154 = por %p152, %p153
    %p156 = scmp.ne.s32.totalorder %s141, %s155
    %p157 = scmp.eq.s32.totalorder %s21, 0
    %p158 = por %p156, %p157
    %s160 = sadd.s32 %s159, 1
    %p163 = scmp.eq.s32.totalorder %s15, 1
    %p164 = scmp.ne.s32.totalorder %s159, %s161
    %p165 = scmp.eq.s32.totalorder %s15, 0
    %p166 = por %p164, %p165
    %p167 = scmp.ne.s32.totalorder %s159, %s161
    %p168 = scmp.eq.s32.totalorder %s20, 1
    %p169 = por %p167, %p168
    %p170 = scmp.ne.s32.totalorder %s161, %s162
    %p171 = scmp.eq.s32.totalorder %s20, 0
    %p172 = por %p170, %p171
    %p173 = scmp.ne.s32.totalorder %s161, %s162
    %p174 = scmp.eq.s32.totalorder %s21, 1
    %p175 = por %p173, %p174
    %p177 = scmp.ne.s32.totalorder %s162, %s176
    %p178 = scmp.eq.s32.totalorder %s21, 0
    %p179 = por %p177, %p178
    %s181 = sadd.s32 %s180, 1
    %p184 = scmp.eq.s32.totalorder %s15, 1
    %p185 = scmp.ne.s32.totalorder %s180, %s182
    %p186 = scmp.eq.s32.totalorder %s15, 0
    %p187 = por %p185, %p186
    %p188 = scmp.ne.s32.totalorder %s180, %s182
    %p189 = scmp.eq.s32.totalorder %s20, 1
    %p190 = por %p188, %p189
    %p191 = scmp.ne.s32.totalorder %s182, %s183
    %p192 = scmp.eq.s32.totalorder %s20, 0
    %p193 = por %p191, %p192
    %p194 = scmp.ne.s32.totalorder %s182, %s183
    %p195 = scmp.eq.s32.totalorder %s21, 1
    %p196 = por %p194, %p195
    %p198 = scmp.ne.s32.totalorder %s183, %s197
    %p199 = scmp.eq.s32.totalorder %s21, 0
    %p200 = por %p198, %p199
    %s202 = sadd.s32 %s201, 1
    %p205 = scmp.eq.s32.totalorder %s15, 1
    %p206 = scmp.ne.s32.totalorder %s201, %s203
    %p207 = scmp.eq.s32.totalorder %s15, 0
    %p208 = por %p206, %p207
    %p209 = scmp.ne.s32.totalorder %s201, %s203
    %p210 = scmp.eq.s32.totalorder %s20, 1
    %p211 = por %p209, %p210
    %p212 = scmp.ne.s32.totalorder %s203, %s204
    %p213 = scmp.eq.s32.totalorder %s20, 0
    %p214 = por %p212, %p213
    %p215 = scmp.ne.s32.totalorder %s203, %s204
    %p216 = scmp.eq.s32.totalorder %s21, 1
    %p217 = por %p215, %p216
    %p219 = scmp.ne.s32.totalorder %s204, %s218
    %p220 = scmp.eq.s32.totalorder %s21, 0
    %p221 = por %p219, %p220
    %s222 = ssub.s32 %s15, %s22
    %p223 = scmp.eq.s32.totalorder %s222, 0
    %s225 = sadd.s32 %s224, 1
    %s226 = scalar_select %p223, %s224, %s225
    %p229 = pneg %p223
    %p230 = scmp.eq.s32.totalorder %s15, 1
    %p231 = por %p229, %p230
    %p232 = scmp.ne.s32.totalorder %s224, %s227
    %p233 = scmp.eq.s32.totalorder %s15, 0
    %p234 = por %p232, %p233
    %p235 = scmp.ne.s32.totalorder %s224, %s227
    %p236 = scmp.eq.s32.totalorder %s20, 1
    %p237 = por %p235, %p236
    %p238 = scmp.ne.s32.totalorder %s227, %s228
    %p239 = scmp.eq.s32.totalorder %s20, 0
    %p240 = por %p238, %p239
    %p241 = scmp.ne.s32.totalorder %s227, %s228
    %p242 = scmp.eq.s32.totalorder %s21, 1
    %p243 = por %p241, %p242
    %p245 = scmp.ne.s32.totalorder %s228, %s244
    %p246 = scmp.eq.s32.totalorder %s21, 0
    %p247 = por %p245, %p246
    %p248 = scmp.le.s32.totalorder 1, %s15
    %p249 = scmp.lt.s32.totalorder %s15, 3
    %p250 = pnand %p248, %p249
    %p251 = pneg %p250
    // Predicated region
    $region9: #{rot_feat_fuser_forward.1} parent=5 // pred_check
      _
    $region10: #{rot_feat_fuser_forward.1} parent=5 // pred_check_branch
      %253 = sbr.rel (%p250) target = $region12
    $region11: #{rot_feat_fuser_forward.1} parent=5 // pred_region
      %s254 = ssub.s32 %s15, 1
      // Predicated region
      $region13: #{rot_feat_fuser_forward.1} parent=11 // pred_check
        %p255 = pneg %p88
      $region14: #{rot_feat_fuser_forward.1} parent=11 // pred_check_branch
        %257 = sbr.rel (%p255) target = $region16
      $region15: #{rot_feat_fuser_forward.1} parent=11 // pred_region
        _
      $region16: #{rot_feat_fuser_forward.1} parent=11 // pred_fallthru
        _
      // Predicated region
      $region17: #{rot_feat_fuser_forward.1} parent=11 // pred_check
        %p258 = pneg %p109
      $region18: #{rot_feat_fuser_forward.1} parent=11 // pred_check_branch
        %260 = sbr.rel (%p258) target = $region20
      $region19: #{rot_feat_fuser_forward.1} parent=11 // pred_region
        _
      $region20: #{rot_feat_fuser_forward.1} parent=11 // pred_fallthru
        _
      // Predicated region
      $region21: #{rot_feat_fuser_forward.1} parent=11 // pred_check
        %p261 = pneg %p130
      $region22: #{rot_feat_fuser_forward.1} parent=11 // pred_check_branch
        %263 = sbr.rel (%p261) target = $region24
      $region23: #{rot_feat_fuser_forward.1} parent=11 // pred_region
        _
      $region24: #{rot_feat_fuser_forward.1} parent=11 // pred_fallthru
        _
      // Predicated region
      $region25: #{rot_feat_fuser_forward.1} parent=11 // pred_check
        %p264 = pneg %p151
      $region26: #{rot_feat_fuser_forward.1} parent=11 // pred_check_branch
        %266 = sbr.rel (%p264) target = $region28
      $region27: #{rot_feat_fuser_forward.1} parent=11 // pred_region
        _
      $region28: #{rot_feat_fuser_forward.1} parent=11 // pred_fallthru
        _
      // Predicated region
      $region29: #{rot_feat_fuser_forward.1} parent=11 // pred_check
        %p267 = pneg %p172
      $region30: #{rot_feat_fuser_forward.1} parent=11 // pred_check_branch
        %269 = sbr.rel (%p267) target = $region32
      $region31: #{rot_feat_fuser_forward.1} parent=11 // pred_region
        _
      $region32: #{rot_feat_fuser_forward.1} parent=11 // pred_fallthru
        _
      // Predicated region
      $region33: #{rot_feat_fuser_forward.1} parent=11 // pred_check
        %p270 = pneg %p193
      $region34: #{rot_feat_fuser_forward.1} parent=11 // pred_check_branch
        %272 = sbr.rel (%p270) target = $region36
      $region35: #{rot_feat_fuser_forward.1} parent=11 // pred_region
        _
      $region36: #{rot_feat_fuser_forward.1} parent=11 // pred_fallthru
        _
      // Predicated region
      $region37: #{rot_feat_fuser_forward.1} parent=11 // pred_check
        %p273 = pneg %p214
      $region38: #{rot_feat_fuser_forward.1} parent=11 // pred_check_branch
        %275 = sbr.rel (%p273) target = $region40
      $region39: #{rot_feat_fuser_forward.1} parent=11 // pred_region
        _
      $region40: #{rot_feat_fuser_forward.1} parent=11 // pred_fallthru
        _
    $region12: #{rot_feat_fuser_forward.1} parent=5 // pred_fallthru
      _
    %p276 = scmp.lt.s32.totalorder %s15, 2
    // Predicated region
    $region41: #{rot_feat_fuser_forward.1} parent=5 // pred_check
      %p277 = pneg %p276
    $region42: #{rot_feat_fuser_forward.1} parent=5 // pred_check_branch
      %279 = sbr.rel (%p277) target = $region44
    $region43: #{rot_feat_fuser_forward.1} parent=5 // pred_region
      // Predicated region
      $region45: #{rot_feat_fuser_forward.1} parent=43 // pred_check
        %p280 = pneg %p35
      $region46: #{rot_feat_fuser_forward.1} parent=43 // pred_check_branch
        %282 = sbr.rel (%p280) target = $region48
      $region47: #{rot_feat_fuser_forward.1} parent=43 // pred_region
        %s283 = smul.u32 32, %s15
        %p284 = scmp.lt.s32.totalorder %s283, 63
        %s285 = scalar_select %p284, %s283, 63
        %s286 = smul.addr %s285, 8
        %s287 = scalar_lea.vmem %s0, %s286
        %s288 = smul.u32 32, %s15
      $region48: #{rot_feat_fuser_forward.1} parent=43 // pred_fallthru
        _
      // Predicated region
      $region49: #{rot_feat_fuser_forward.1} parent=43 // pred_check
        %p289 = pneg %p61
      $region50: #{rot_feat_fuser_forward.1} parent=43 // pred_check_branch
        %291 = sbr.rel (%p289) target = $region52
      $region51: #{rot_feat_fuser_forward.1} parent=43 // pred_region
        %s292 = smul.u32 32, %s15
        %p293 = scmp.lt.s32.totalorder %s292, 63
        %s294 = scalar_select %p293, %s292, 63
        %s295 = smul.addr %s294, 8
        %s296 = scalar_lea.vmem %s1, %s295
        %s297 = smul.u32 32, %s15
      $region52: #{rot_feat_fuser_forward.1} parent=43 // pred_fallthru
        _
    $region44: #{rot_feat_fuser_forward.1} parent=5 // pred_fallthru
      _
    %p298 = scmp.le.s32.totalorder 1, %s15
    %p299 = scmp.lt.s32.totalorder %s15, 3
    %p300 = pnand %p298, %p299
    %p301 = pneg %p300
    // Predicated region
    $region53: #{rot_feat_fuser_forward.1} parent=5 // pred_check
      _
    $region54: #{rot_feat_fuser_forward.1} parent=5 // pred_check_branch
      %303 = sbr.rel (%p300) target = $region56
    $region55: #{rot_feat_fuser_forward.1} parent=5 // pred_region
      %s304 = ssub.s32 %s15, 1
      %s305 = smul.u32 32, %s20
      %p306 = scmp.lt.s32.totalorder %s305, 63
      %s307 = scalar_select %p306, %s305, 63
      %s308 = smul.addr %s307, 8
      %s309 = scalar_lea.vmem %s0, %s308
      %p310 = pneg %p41
      %p311 = pneg %p38
      %s312 = smul.u32 32, %s20
      %p313 = scmp.lt.s32.totalorder %s312, 63
      %s314 = scalar_select %p313, %s312, 63
      %s315 = smul.addr %s314, 8
      %s316 = scalar_lea.vmem %s1, %s315
      %p317 = pneg %p67
      %p318 = pneg %p64
      %p319 = pneg %p88
      %p320 = pneg %p85
      %p321 = pneg %p109
      %p322 = pneg %p106
      %p323 = pneg %p130
      %p324 = pneg %p127
      %p325 = pneg %p151
      %p326 = pneg %p148
      %p327 = pneg %p172
      %p328 = pneg %p169
      %p329 = pneg %p193
      %p330 = pneg %p190
      %p331 = pneg %p214
      %p332 = pneg %p211
      %p333 = pneg %p240
      %p334 = pneg %p237
      %s335 = smul.u32 32, %s20
      %p336 = scmp.lt.s32.totalorder %s335, 63
      %s337 = scalar_select %p336, %s335, 63
      %s338 = smul.addr %s337, 8
      %s339 = scalar_lea.vmem %s9, %s338
      %s340 = smul.u32 32, %s20
      %p341 = scmp.lt.s32.totalorder %s340, 63
      %s342 = scalar_select %p341, %s340, 63
      %s343 = smul.addr %s342, 8
      %s344 = scalar_lea.vmem %s0, %s343
      %s345 = smul.u32 32, %s20
      %s346 = smul.u32 32, %s20
      %p347 = scmp.lt.s32.totalorder %s346, 63
      %s348 = scalar_select %p347, %s346, 63
      %s349 = smul.addr %s348, 8
      %s350 = scalar_lea.vmem %s1, %s349
      %s351 = smul.u32 32, %s20
      %s352 = smul.u32 32, %s20
      %p353 = scmp.lt.s32.totalorder %s352, 63
      %s354 = scalar_select %p353, %s352, 63
      %s355 = smul.addr %s354, 8
      %s356 = scalar_lea.vmem %s9, %s355
      %s357 = smul.u32 32, %s20
      %v358 = vld [vmem:[%s344] sm:$0xff]
      %v359 = vld [vmem:[%s344 + $0x8] sm:$0xff]
      %v360 = vld [vmem:[%s344 + $0x10] sm:$0xff]
      %v361 = vld [vmem:[%s344 + $0x18] sm:$0xff]
      %v362 = vld [vmem:[%s344 + $0x20] sm:$0xff]
      %v363 = vld [vmem:[%s344 + $0x28] sm:$0xff]
      %v364 = vld [vmem:[%s344 + $0x30] sm:$0xff]
      %v365 = vld [vmem:[%s344 + $0x38] sm:$0xff]
      %v366 = vld [vmem:[%s344 + $0x40] sm:$0xff]
      %v367 = vld [vmem:[%s344 + $0x48] sm:$0xff]
      %v368 = vld [vmem:[%s344 + $0x50] sm:$0xff]
      %v369 = vld [vmem:[%s344 + $0x58] sm:$0xff]
      %v370 = vld [vmem:[%s344 + $0x60] sm:$0xff]
      %v371 = vld [vmem:[%s344 + $0x68] sm:$0xff]
      %v372 = vld [vmem:[%s344 + $0x70] sm:$0xff]
      %v373 = vld [vmem:[%s344 + $0x78] sm:$0xff]
      %v374 = vld [vmem:[%s344 + $0x80] sm:$0xff]
      %v375 = vld [vmem:[%s344 + $0x88] sm:$0xff]
      %v376 = vld [vmem:[%s344 + $0x90] sm:$0xff]
      %v377 = vld [vmem:[%s344 + $0x98] sm:$0xff]
      %v378 = vld [vmem:[%s344 + $0xa0] sm:$0xff]
      %v379 = vld [vmem:[%s344 + $0xa8] sm:$0xff]
      %v380 = vld [vmem:[%s344 + $0xb0] sm:$0xff]
      %v381 = vld [vmem:[%s344 + $0xb8] sm:$0xff]
      %v382 = vld [vmem:[%s344 + $0xc0] sm:$0xff]
      %v383 = vld [vmem:[%s344 + $0xc8] sm:$0xff]
      %v384 = vld [vmem:[%s344 + $0xd0] sm:$0xff]
      %v385 = vld [vmem:[%s344 + $0xd8] sm:$0xff]
      %v386 = vld [vmem:[%s344 + $0xe0] sm:$0xff]
      %v387 = vld [vmem:[%s344 + $0xe8] sm:$0xff]
      %v388 = vld [vmem:[%s344 + $0xf0] sm:$0xff]
      %v389 = vld [vmem:[%s344 + $0xf8] sm:$0xff]
      %v390 = vld [vmem:[%s350] sm:$0xff]
      %v391 = vld [vmem:[%s350 + $0x8] sm:$0xff]
      %v392 = vld [vmem:[%s350 + $0x10] sm:$0xff]
      %v393 = vld [vmem:[%s350 + $0x18] sm:$0xff]
      %v394 = vld [vmem:[%s350 + $0x20] sm:$0xff]
      %v395 = vld [vmem:[%s350 + $0x28] sm:$0xff]
      %v396 = vld [vmem:[%s350 + $0x30] sm:$0xff]
      %v397 = vld [vmem:[%s350 + $0x38] sm:$0xff]
      %v398 = vld [vmem:[%s350 + $0x40] sm:$0xff]
      %v399 = vld [vmem:[%s350 + $0x48] sm:$0xff]
      %v400 = vld [vmem:[%s350 + $0x50] sm:$0xff]
      %v401 = vld [vmem:[%s350 + $0x58] sm:$0xff]
      %v402 = vld [vmem:[%s350 + $0x60] sm:$0xff]
      %v403 = vld [vmem:[%s350 + $0x68] sm:$0xff]
      %v404 = vld [vmem:[%s350 + $0x70] sm:$0xff]
      %v405 = vld [vmem:[%s350 + $0x78] sm:$0xff]
      %v406 = vld [vmem:[%s350 + $0x80] sm:$0xff]
      %v407 = vld [vmem:[%s350 + $0x88] sm:$0xff]
      %v408 = vld [vmem:[%s350 + $0x90] sm:$0xff]
      %v409 = vld [vmem:[%s350 + $0x98] sm:$0xff]
      %v410 = vld [vmem:[%s350 + $0xa0] sm:$0xff]
      %v411 = vld [vmem:[%s350 + $0xa8] sm:$0xff]
      %v412 = vld [vmem:[%s350 + $0xb0] sm:$0xff]
      %v413 = vld [vmem:[%s350 + $0xb8] sm:$0xff]
      %v414 = vld [vmem:[%s350 + $0xc0] sm:$0xff]
      %v415 = vld [vmem:[%s350 + $0xc8] sm:$0xff]
      %v416 = vld [vmem:[%s350 + $0xd0] sm:$0xff]
      %v417 = vld [vmem:[%s350 + $0xd8] sm:$0xff]
      %v418 = vld [vmem:[%s350 + $0xe0] sm:$0xff]
      %v419 = vld [vmem:[%s350 + $0xe8] sm:$0xff]
      %v420 = vld [vmem:[%s350 + $0xf0] sm:$0xff]
      %v421 = vld [vmem:[%s350 + $0xf8] sm:$0xff]
      %v422 = vld [vmem:[%s2] sm:$0xff]
      %v423 = vld [vmem:[%s2 + $0x8] sm:$0xff]
      %v424 = vld [vmem:[%s2 + $0x10] sm:$0xff]
      %v425 = vld [vmem:[%s3] sm:$0xff]
      %v426 = vld [vmem:[%s3 + $0x8] sm:$0xff]
      %v427 = vld [vmem:[%s3 + $0x10] sm:$0xff]
      %vm428 = vcmask 195584
      %v430 = vsel %vm428, %v390, 0
      %v433 = vsel %vm428, %v391, 0
      %v436 = vsel %vm428, %v392, 0
      %v439 = vsel %vm428, %v393, 0
      %v442 = vsel %vm428, %v394, 0
      %v445 = vsel %vm428, %v395, 0
      %v448 = vsel %vm428, %v396, 0
      %v451 = vsel %vm428, %v397, 0
      %v454 = vsel %vm428, %v398, 0
      %v457 = vsel %vm428, %v399, 0
      %v460 = vsel %vm428, %v400, 0
      %v463 = vsel %vm428, %v401, 0
      %v466 = vsel %vm428, %v402, 0
      %v469 = vsel %vm428, %v403, 0
      %v472 = vsel %vm428, %v404, 0
      %v475 = vsel %vm428, %v405, 0
      %v478 = vsel %vm428, %v406, 0
      %v481 = vsel %vm428, %v407, 0
      %v484 = vsel %vm428, %v408, 0
      %v487 = vsel %vm428, %v409, 0
      %v490 = vsel %vm428, %v410, 0
      %v493 = vsel %vm428, %v411, 0
      %v496 = vsel %vm428, %v412, 0
      %v499 = vsel %vm428, %v413, 0
      %v502 = vsel %vm428, %v414, 0
      %v505 = vsel %vm428, %v415, 0
      %v508 = vsel %vm428, %v416, 0
      %v511 = vsel %vm428, %v417, 0
      %v514 = vsel %vm428, %v418, 0
      %v517 = vsel %vm428, %v419, 0
      %v520 = vsel %vm428, %v420, 0
      %v523 = vsel %vm428, %v421, 0
      %525 = vmatprep.subr.mxu0 0.0
      %526 = vmatpush1.msra.mxu0 %v425
      %527 = vmatprep.subr.mxu0 0.0
      %528 = vmatpush1.msra.mxu0 %v426
      %529 = vmatprep.subr.mxu0 0.0
      %530 = vmatpush1.msra.mxu0 %v427
      %531 = vmatprep.subr.mxu0 0.0
      %532 = vmatpush1.msra.mxu0 0.0
      %533 = vmatprep.subr.mxu0 0.0
      %534 = vmatpush1.msra.mxu0 0.0
      %535 = vmatprep.subr.mxu0 0.0
      %536 = vmatpush1.msra.mxu0 0.0
      %537 = vmatprep.subr.mxu0 0.0
      %538 = vmatpush1.msra.mxu0 0.0
      %539 = vmatprep.subr.mxu0 0.0
      %540 = vmatpush1.msra.mxu0 0.0
      %541 = vmatprep.subr.mxu0 0.0
      %542 = vmatpush1.msra.mxu0 0.0
      %543 = vmatprep.subr.mxu0 0.0
      %544 = vmatpush1.msra.mxu0 0.0
      %545 = vmatprep.subr.mxu0 0.0
      %546 = vmatpush1.msra.mxu0 0.0
      %547 = vmatprep.subr.mxu0 0.0
      %548 = vmatpush1.msra.mxu0 0.0
      %549 = vmatprep.subr.mxu0 0.0
      %550 = vmatpush1.msra.mxu0 0.0
      %551 = vmatprep.subr.mxu0 0.0
      %552 = vmatpush1.msra.mxu0 0.0
      %553 = vmatprep.subr.mxu0 0.0
      %554 = vmatpush1.msra.mxu0 0.0
      %555 = vmatprep.subr.mxu0 0.0
      %556 = vmatpush1.msra.mxu0 0.0
      %557 = vmatprep.subr.mxu0 0.0
      %558 = vmatpush1.msra.mxu0 0.0
      %559 = vmatprep.subr.mxu0 0.0
      %560 = vmatpush1.msra.mxu0 0.0
      %561 = vmatprep.subr.mxu0 0.0
      %562 = vmatpush1.msra.mxu0 0.0
      %563 = vmatprep.subr.mxu0 0.0
      %564 = vmatpush1.msra.mxu0 0.0
      %565 = vmatprep.subr.mxu0 0.0
      %566 = vmatpush1.msra.mxu0 0.0
      %567 = vmatprep.subr.mxu0 0.0
      %568 = vmatpush1.msra.mxu0 0.0
      %569 = vmatprep.subr.mxu0 0.0
      %570 = vmatpush1.msra.mxu0 0.0
      %571 = vmatprep.subr.mxu0 0.0
      %572 = vmatpush1.msra.mxu0 0.0
      %573 = vmatprep.subr.mxu0 0.0
      %574 = vmatpush1.msra.mxu0 0.0
      %575 = vmatprep.subr.mxu0 0.0
      %576 = vmatpush1.msra.mxu0 0.0
      %577 = vmatprep.subr.mxu0 0.0
      %578 = vmatpush1.msra.mxu0 0.0
      %579 = vmatprep.subr.mxu0 0.0
      %580 = vmatpush1.msra.mxu0 0.0
      %581 = vmatprep.subr.mxu0 0.0
      %582 = vmatpush1.msra.mxu0 0.0
      %583 = vmatprep.subr.mxu0 0.0
      %584 = vmatpush1.msra.mxu0 0.0
      %585 = vmatprep.subr.mxu0 0.0
      %586 = vmatpush1.msra.mxu0 0.0
      %587 = vmatprep.subr.mxu0 0.0
      %588 = vmatpush1.msra.mxu0 0.0
      %589 = vmatprep.mubr.f32.mxu0 0.0
      %590 = vmatmul.mubr.f32.gmra.mrb[0].mxu0 %v430
      %v591 = vpop.f32.mrb[0].mxu0
      %v592 = vadd.f32 0.0, %v591
      %v593 = vpop.f32.mrb[0].mxu0
      %594 = vmatprep.mubr.f32.mxu0 0.0
      %595 = vmatmul.mubr.f32.gmra.mrb[0].mxu0 %v433
      %v596 = vpop.f32.mrb[0].mxu0
      %v597 = vadd.f32 0.0, %v596
      %v598 = vpop.f32.mrb[0].mxu0
      %599 = vmatprep.mubr.f32.mxu0 0.0
      %600 = vmatmul.mubr.f32.gmra.mrb[0].mxu0 %v436
      %v601 = vpop.f32.mrb[0].mxu0
      %v602 = vadd.f32 0.0, %v601
      %v603 = vpop.f32.mrb[0].mxu0
      %604 = vmatprep.mubr.f32.mxu0 0.0
      %605 = vmatmul.mubr.f32.gmra.mrb[0].mxu0 %v439
      %v606 = vpop.f32.mrb[0].mxu0
      %v607 = vadd.f32 0.0, %v606
      %v608 = vpop.f32.mrb[0].mxu0
      %609 = vmatprep.mubr.f32.mxu0 0.0
      %610 = vmatmul.mubr.f32.gmra.mrb[0].mxu0 %v442
      %v611 = vpop.f32.mrb[0].mxu0
      %v612 = vadd.f32 0.0, %v611
      %v613 = vpop.f32.mrb[0].mxu0
      %614 = vmatprep.mubr.f32.mxu0 0.0
      %615 = vmatmul.mubr.f32.gmra.mrb[0].mxu0 %v445
      %v616 = vpop.f32.mrb[0].mxu0
      %v617 = vadd.f32 0.0, %v616
      %v618 = vpop.f32.mrb[0].mxu0
      %619 = vmatprep.mubr.f32.mxu0 0.0
      %620 = vmatmul.mubr.f32.gmra.mrb[0].mxu0 %v448
      %v621 = vpop.f32.mrb[0].mxu0
      %v622 = vadd.f32 0.0, %v621
      %v623 = vpop.f32.mrb[0].mxu0
      %624 = vmatprep.mubr.f32.mxu0 0.0
      %625 = vmatmul.mubr.f32.gmra.mrb[0].mxu0 %v451
      %v626 = vpop.f32.mrb[0].mxu0
      %v627 = vadd.f32 0.0, %v626
      %v628 = vpop.f32.mrb[0].mxu0
      %629 = vmatprep.mubr.f32.mxu0 0.0
      %630 = vmatmul.mubr.f32.gmra.mrb[0].mxu0 %v454
      %v631 = vpop.f32.mrb[0].mxu0
      %v632 = vadd.f32 0.0, %v631
      %v633 = vpop.f32.mrb[0].mxu0
      %634 = vmatprep.mubr.f32.mxu0 0.0
      %635 = vmatmul.mubr.f32.gmra.mrb[0].mxu0 %v457
      %v636 = vpop.f32.mrb[0].mxu0
      %v637 = vadd.f32 0.0, %v636
      %v638 = vpop.f32.mrb[0].mxu0
      %639 = vmatprep.mubr.f32.mxu0 0.0
      %640 = vmatmul.mubr.f32.gmra.mrb[0].mxu0 %v460
      %v641 = vpop.f32.mrb[0].mxu0
      %v642 = vadd.f32 0.0, %v641
      %v643 = vpop.f32.mrb[0].mxu0
      %644 = vmatprep.mubr.f32.mxu0 0.0
      %645 = vmatmul.mubr.f32.gmra.mrb[0].mxu0 %v463
      %v646 = vpop.f32.mrb[0].mxu0
      %v647 = vadd.f32 0.0, %v646
      %v648 = vpop.f32.mrb[0].mxu0
      %649 = vmatprep.mubr.f32.mxu0 0.0
      %650 = vmatmul.mubr.f32.gmra.mrb[0].mxu0 %v466
      %v651 = vpop.f32.mrb[0].mxu0
      %v652 = vadd.f32 0.0, %v651
      %v653 = vpop.f32.mrb[0].mxu0
      %654 = vmatprep.mubr.f32.mxu0 0.0
      %655 = vmatmul.mubr.f32.gmra.mrb[0].mxu0 %v469
      %v656 = vpop.f32.mrb[0].mxu0
      %v657 = vadd.f32 0.0, %v656
      %v658 = vpop.f32.mrb[0].mxu0
      %659 = vmatprep.mubr.f32.mxu0 0.0
      %660 = vmatmul.mubr.f32.gmra.mrb[0].mxu0 %v472
      %v661 = vpop.f32.mrb[0].mxu0
      %v662 = vadd.f32 0.0, %v661
      %v663 = vpop.f32.mrb[0].mxu0
      %664 = vmatprep.mubr.f32.mxu0 0.0
      %665 = vmatmul.mubr.f32.gmra.mrb[0].mxu0 %v475
      %v666 = vpop.f32.mrb[0].mxu0
      %v667 = vadd.f32 0.0, %v666
      %v668 = vpop.f32.mrb[0].mxu0
      %669 = vmatprep.mubr.f32.mxu0 0.0
      %670 = vmatmul.mubr.f32.gmra.mrb[0].mxu0 %v478
      %v671 = vpop.f32.mrb[0].mxu0
      %v672 = vadd.f32 0.0, %v671
      %v673 = vpop.f32.mrb[0].mxu0
      %674 = vmatprep.mubr.f32.mxu0 0.0
      %675 = vmatmul.mubr.f32.gmra.mrb[0].mxu0 %v481
      %v676 = vpop.f32.mrb[0].mxu0
      %v677 = vadd.f32 0.0, %v676
      %v678 = vpop.f32.mrb[0].mxu0
      %679 = vmatprep.mubr.f32.mxu0 0.0
      %680 = vmatmul.mubr.f32.gmra.mrb[0].mxu0 %v484
      %v681 = vpop.f32.mrb[0].mxu0
      %v682 = vadd.f32 0.0, %v681
      %v683 = vpop.f32.mrb[0].mxu0
      %684 = vmatprep.mubr.f32.mxu0 0.0
      %685 = vmatmul.mubr.f32.gmra.mrb[0].mxu0 %v487
      %v686 = vpop.f32.mrb[0].mxu0
      %v687 = vadd.f32 0.0, %v686
      %v688 = vpop.f32.mrb[0].mxu0
      %689 = vmatprep.mubr.f32.mxu0 0.0
      %690 = vmatmul.mubr.f32.gmra.mrb[0].mxu0 %v490
      %v691 = vpop.f32.mrb[0].mxu0
      %v692 = vadd.f32 0.0, %v691
      %v693 = vpop.f32.mrb[0].mxu0
      %694 = vmatprep.mubr.f32.mxu0 0.0
      %695 = vmatmul.mubr.f32.gmra.mrb[0].mxu0 %v493
      %v696 = vpop.f32.mrb[0].mxu0
      %v697 = vadd.f32 0.0, %v696
      %v698 = vpop.f32.mrb[0].mxu0
      %699 = vmatprep.mubr.f32.mxu0 0.0
      %700 = vmatmul.mubr.f32.gmra.mrb[0].mxu0 %v496
      %v701 = vpop.f32.mrb[0].mxu0
      %v702 = vadd.f32 0.0, %v701
      %v703 = vpop.f32.mrb[0].mxu0
      %704 = vmatprep.mubr.f32.mxu0 0.0
      %705 = vmatmul.mubr.f32.gmra.mrb[0].mxu0 %v499
      %v706 = vpop.f32.mrb[0].mxu0
      %v707 = vadd.f32 0.0, %v706
      %v708 = vpop.f32.mrb[0].mxu0
      %709 = vmatprep.mubr.f32.mxu0 0.0
      %710 = vmatmul.mubr.f32.gmra.mrb[0].mxu0 %v502
      %v711 = vpop.f32.mrb[0].mxu0
      %v712 = vadd.f32 0.0, %v711
      %v713 = vpop.f32.mrb[0].mxu0
      %714 = vmatprep.mubr.f32.mxu0 0.0
      %715 = vmatmul.mubr.f32.gmra.mrb[0].mxu0 %v505
      %v716 = vpop.f32.mrb[0].mxu0
      %v717 = vadd.f32 0.0, %v716
      %v718 = vpop.f32.mrb[0].mxu0
      %719 = vmatprep.mubr.f32.mxu0 0.0
      %720 = vmatmul.mubr.f32.gmra.mrb[0].mxu0 %v508
      %v721 = vpop.f32.mrb[0].mxu0
      %v722 = vadd.f32 0.0, %v721
      %v723 = vpop.f32.mrb[0].mxu0
      %724 = vmatprep.mubr.f32.mxu0 0.0
      %725 = vmatmul.mubr.f32.gmra.mrb[0].mxu0 %v511
      %v726 = vpop.f32.mrb[0].mxu0
      %v727 = vadd.f32 0.0, %v726
      %v728 = vpop.f32.mrb[0].mxu0
      %729 = vmatprep.mubr.f32.mxu0 0.0
      %730 = vmatmul.mubr.f32.gmra.mrb[0].mxu0 %v514
      %v731 = vpop.f32.mrb[0].mxu0
      %v732 = vadd.f32 0.0, %v731
      %v733 = vpop.f32.mrb[0].mxu0
      %734 = vmatprep.mubr.f32.mxu0 0.0
      %735 = vmatmul.mubr.f32.gmra.mrb[0].mxu0 %v517
      %v736 = vpop.f32.mrb[0].mxu0
      %v737 = vadd.f32 0.0, %v736
      %v738 = vpop.f32.mrb[0].mxu0
      %739 = vmatprep.mubr.f32.mxu0 0.0
      %740 = vmatmul.mubr.f32.gmra.mrb[0].mxu0 %v520
      %v741 = vpop.f32.mrb[0].mxu0
      %v742 = vadd.f32 0.0, %v741
      %v743 = vpop.f32.mrb[0].mxu0
      %744 = vmatprep.mubr.f32.mxu0 0.0
      %745 = vmatmul.mubr.f32.gmra.mrb[0].mxu0 %v523
      %v746 = vpop.f32.mrb[0].mxu0
      %v747 = vadd.f32 0.0, %v746
      %v748 = vpop.f32.mrb[0].mxu0
      %749 = vdwg.mxu0
      %v751 = vsel %vm428, %v358, 0
      %v754 = vsel %vm428, %v359, 0
      %v757 = vsel %vm428, %v360, 0
      %v760 = vsel %vm428, %v361, 0
      %v763 = vsel %vm428, %v362, 0
      %v766 = vsel %vm428, %v363, 0
      %v769 = vsel %vm428, %v364, 0
      %v772 = vsel %vm428, %v365, 0
      %v775 = vsel %vm428, %v366, 0
      %v778 = vsel %vm428, %v367, 0
      %v781 = vsel %vm428, %v368, 0
      %v784 = vsel %vm428, %v369, 0
      %v787 = vsel %vm428, %v370, 0
      %v790 = vsel %vm428, %v371, 0
      %v793 = vsel %vm428, %v372, 0
      %v796 = vsel %vm428, %v373, 0
      %v799 = vsel %vm428, %v374, 0
      %v802 = vsel %vm428, %v375, 0
      %v805 = vsel %vm428, %v376, 0
      %v808 = vsel %vm428, %v377, 0
      %v811 = vsel %vm428, %v378, 0
      %v814 = vsel %vm428, %v379, 0
      %v817 = vsel %vm428, %v380, 0
      %v820 = vsel %vm428, %v381, 0
      %v823 = vsel %vm428, %v382, 0
      %v826 = vsel %vm428, %v383, 0
      %v829 = vsel %vm428, %v384, 0
      %v832 = vsel %vm428, %v385, 0
      %v835 = vsel %vm428, %v386, 0
      %v838 = vsel %vm428, %v387, 0
      %v841 = vsel %vm428, %v388, 0
      %v844 = vsel %vm428, %v389, 0
      %846 = vmatprep.subr.mxu0 0.0
      %847 = vmatpush1.msra.mxu0 %v422
      %848 = vmatprep.subr.mxu0 0.0
      %849 = vmatpush1.msra.mxu0 %v423
      %850 = vmatprep.subr.mxu0 0.0
      %851 = vmatpush1.msra.mxu0 %v424
      %852 = vmatprep.subr.mxu0 0.0
      %853 = vmatpush1.msra.mxu0 0.0
      %854 = vmatprep.subr.mxu0 0.0
      %855 = vmatpush1.msra.mxu0 0.0
      %856 = vmatprep.subr.mxu0 0.0
      %857 = vmatpush1.msra.mxu0 0.0
      %858 = vmatprep.subr.mxu0 0.0
      %859 = vmatpush1.msra.mxu0 0.0
      %860 = vmatprep.subr.mxu0 0.0
      %861 = vmatpush1.msra.mxu0 0.0
      %862 = vmatprep.subr.mxu0 0.0
      %863 = vmatpush1.msra.mxu0 0.0
      %864 = vmatprep.subr.mxu0 0.0
      %865 = vmatpush1.msra.mxu0 0.0
      %866 = vmatprep.subr.mxu0 0.0
      %867 = vmatpush1.msra.mxu0 0.0
      %868 = vmatprep.subr.mxu0 0.0
      %869 = vmatpush1.msra.mxu0 0.0
      %870 = vmatprep.subr.mxu0 0.0
      %871 = vmatpush1.msra.mxu0 0.0
      %872 = vmatprep.subr.mxu0 0.0
      %873 = vmatpush1.msra.mxu0 0.0
      %874 = vmatprep.subr.mxu0 0.0
      %875 = vmatpush1.msra.mxu0 0.0
      %876 = vmatprep.subr.mxu0 0.0
      %877 = vmatpush1.msra.mxu0 0.0
      %878 = vmatprep.subr.mxu0 0.0
      %879 = vmatpush1.msra.mxu0 0.0
      %880 = vmatprep.subr.mxu0 0.0
      %881 = vmatpush1.msra.mxu0 0.0
      %882 = vmatprep.subr.mxu0 0.0
      %883 = vmatpush1.msra.mxu0 0.0
      %884 = vmatprep.subr.mxu0 0.0
      %885 = vmatpush1.msra.mxu0 0.0
      %886 = vmatprep.subr.mxu0 0.0
      %887 = vmatpush1.msra.mxu0 0.0
      %888 = vmatprep.subr.mxu0 0.0
      %889 = vmatpush1.msra.mxu0 0.0
      %890 = vmatprep.subr.mxu0 0.0
      %891 = vmatpush1.msra.mxu0 0.0
      %892 = vmatprep.subr.mxu0 0.0
      %893 = vmatpush1.msra.mxu0 0.0
      %894 = vmatprep.subr.mxu0 0.0
      %895 = vmatpush1.msra.mxu0 0.0
      %896 = vmatprep.subr.mxu0 0.0
      %897 = vmatpush1.msra.mxu0 0.0
      %898 = vmatprep.subr.mxu0 0.0
      %899 = vmatpush1.msra.mxu0 0.0
      %900 = vmatprep.subr.mxu0 0.0
      %901 = vmatpush1.msra.mxu0 0.0
      %902 = vmatprep.subr.mxu0 0.0
      %903 = vmatpush1.msra.mxu0 0.0
      %904 = vmatprep.subr.mxu0 0.0
      %905 = vmatpush1.msra.mxu0 0.0
      %906 = vmatprep.subr.mxu0 0.0
      %907 = vmatpush1.msra.mxu0 0.0
      %908 = vmatprep.subr.mxu0 0.0
      %909 = vmatpush1.msra.mxu0 0.0
      %910 = vmatprep.mubr.f32.mxu0 0.0
      %911 = vmatmul.mubr.f32.gmra.mrb[0].mxu0 %v751
      %v912 = vpop.f32.mrb[0].mxu0
      %v913 = vadd.f32 %v592, %v912
      %v914 = vpop.f32.mrb[0].mxu0
      %915 = vmatprep.mubr.f32.mxu0 0.0
      %916 = vmatmul.mubr.f32.gmra.mrb[0].mxu0 %v754
      %v917 = vpop.f32.mrb[0].mxu0
      %v918 = vadd.f32 %v597, %v917
      %v919 = vpop.f32.mrb[0].mxu0
      %920 = vmatprep.mubr.f32.mxu0 0.0
      %921 = vmatmul.mubr.f32.gmra.mrb[0].mxu0 %v757
      %v922 = vpop.f32.mrb[0].mxu0
      %v923 = vadd.f32 %v602, %v922
      %v924 = vpop.f32.mrb[0].mxu0
      %925 = vmatprep.mubr.f32.mxu0 0.0
      %926 = vmatmul.mubr.f32.gmra.mrb[0].mxu0 %v760
      %v927 = vpop.f32.mrb[0].mxu0
      %v928 = vadd.f32 %v607, %v927
      %v929 = vpop.f32.mrb[0].mxu0
      %930 = vmatprep.mubr.f32.mxu0 0.0
      %931 = vmatmul.mubr.f32.gmra.mrb[0].mxu0 %v763
      %v932 = vpop.f32.mrb[0].mxu0
      %v933 = vadd.f32 %v612, %v932
      %v934 = vpop.f32.mrb[0].mxu0
      %935 = vmatprep.mubr.f32.mxu0 0.0
      %936 = vmatmul.mubr.f32.gmra.mrb[0].mxu0 %v766
      %v937 = vpop.f32.mrb[0].mxu0
      %v938 = vadd.f32 %v617, %v937
      %v939 = vpop.f32.mrb[0].mxu0
      %940 = vmatprep.mubr.f32.mxu0 0.0
      %941 = vmatmul.mubr.f32.gmra.mrb[0].mxu0 %v769
      %v942 = vpop.f32.mrb[0].mxu0
      %v943 = vadd.f32 %v622, %v942
      %v944 = vpop.f32.mrb[0].mxu0
      %945 = vmatprep.mubr.f32.mxu0 0.0
      %946 = vmatmul.mubr.f32.gmra.mrb[0].mxu0 %v772
      %v947 = vpop.f32.mrb[0].mxu0
      %v948 = vadd.f32 %v627, %v947
      %v949 = vpop.f32.mrb[0].mxu0
      %950 = vmatprep.mubr.f32.mxu0 0.0
      %951 = vmatmul.mubr.f32.gmra.mrb[0].mxu0 %v775
      %v952 = vpop.f32.mrb[0].mxu0
      %v953 = vadd.f32 %v632, %v952
      %v954 = vpop.f32.mrb[0].mxu0
      %955 = vmatprep.mubr.f32.mxu0 0.0
      %956 = vmatmul.mubr.f32.gmra.mrb[0].mxu0 %v778
      %v957 = vpop.f32.mrb[0].mxu0
      %v958 = vadd.f32 %v637, %v957
      %v959 = vpop.f32.mrb[0].mxu0
      %960 = vmatprep.mubr.f32.mxu0 0.0
      %961 = vmatmul.mubr.f32.gmra.mrb[0].mxu0 %v781
      %v962 = vpop.f32.mrb[0].mxu0
      %v963 = vadd.f32 %v642, %v962
      %v964 = vpop.f32.mrb[0].mxu0
      %965 = vmatprep.mubr.f32.mxu0 0.0
      %966 = vmatmul.mubr.f32.gmra.mrb[0].mxu0 %v784
      %v967 = vpop.f32.mrb[0].mxu0
      %v968 = vadd.f32 %v647, %v967
      %v969 = vpop.f32.mrb[0].mxu0
      %970 = vmatprep.mubr.f32.mxu0 0.0
      %971 = vmatmul.mubr.f32.gmra.mrb[0].mxu0 %v787
      %v972 = vpop.f32.mrb[0].mxu0
      %v973 = vadd.f32 %v652, %v972
      %v974 = vpop.f32.mrb[0].mxu0
      %975 = vmatprep.mubr.f32.mxu0 0.0
      %976 = vmatmul.mubr.f32.gmra.mrb[0].mxu0 %v790
      %v977 = vpop.f32.mrb[0].mxu0
      %v978 = vadd.f32 %v657, %v977
      %v979 = vpop.f32.mrb[0].mxu0
      %980 = vmatprep.mubr.f32.mxu0 0.0
      %981 = vmatmul.mubr.f32.gmra.mrb[0].mxu0 %v793
      %v982 = vpop.f32.mrb[0].mxu0
      %v983 = vadd.f32 %v662, %v982
      %v984 = vpop.f32.mrb[0].mxu0
      %985 = vmatprep.mubr.f32.mxu0 0.0
      %986 = vmatmul.mubr.f32.gmra.mrb[0].mxu0 %v796
      %v987 = vpop.f32.mrb[0].mxu0
      %v988 = vadd.f32 %v667, %v987
      %v989 = vpop.f32.mrb[0].mxu0
      %990 = vmatprep.mubr.f32.mxu0 0.0
      %991 = vmatmul.mubr.f32.gmra.mrb[0].mxu0 %v799
      %v992 = vpop.f32.mrb[0].mxu0
      %v993 = vadd.f32 %v672, %v992
      %v994 = vpop.f32.mrb[0].mxu0
      %995 = vmatprep.mubr.f32.mxu0 0.0
      %996 = vmatmul.mubr.f32.gmra.mrb[0].mxu0 %v802
      %v997 = vpop.f32.mrb[0].mxu0
      %v998 = vadd.f32 %v677, %v997
      %v999 = vpop.f32.mrb[0].mxu0
      %1000 = vmatprep.mubr.f32.mxu0 0.0
      %1001 = vmatmul.mubr.f32.gmra.mrb[0].mxu0 %v805
      %v1002 = vpop.f32.mrb[0].mxu0
      %v1003 = vadd.f32 %v682, %v1002
      %v1004 = vpop.f32.mrb[0].mxu0
      %1005 = vmatprep.mubr.f32.mxu0 0.0
      %1006 = vmatmul.mubr.f32.gmra.mrb[0].mxu0 %v808
      %v1007 = vpop.f32.mrb[0].mxu0
      %v1008 = vadd.f32 %v687, %v1007
      %v1009 = vpop.f32.mrb[0].mxu0
      %1010 = vmatprep.mubr.f32.mxu0 0.0
      %1011 = vmatmul.mubr.f32.gmra.mrb[0].mxu0 %v811
      %v1012 = vpop.f32.mrb[0].mxu0
      %v1013 = vadd.f32 %v692, %v1012
      %v1014 = vpop.f32.mrb[0].mxu0
      %1015 = vmatprep.mubr.f32.mxu0 0.0
      %1016 = vmatmul.mubr.f32.gmra.mrb[0].mxu0 %v814
      %v1017 = vpop.f32.mrb[0].mxu0
      %v1018 = vadd.f32 %v697, %v1017
      %v1019 = vpop.f32.mrb[0].mxu0
      %1020 = vmatprep.mubr.f32.mxu0 0.0
      %1021 = vmatmul.mubr.f32.gmra.mrb[0].mxu0 %v817
      %v1022 = vpop.f32.mrb[0].mxu0
      %v1023 = vadd.f32 %v702, %v1022
      %v1024 = vpop.f32.mrb[0].mxu0
      %1025 = vmatprep.mubr.f32.mxu0 0.0
      %1026 = vmatmul.mubr.f32.gmra.mrb[0].mxu0 %v820
      %v1027 = vpop.f32.mrb[0].mxu0
      %v1028 = vadd.f32 %v707, %v1027
      %v1029 = vpop.f32.mrb[0].mxu0
      %1030 = vmatprep.mubr.f32.mxu0 0.0
      %1031 = vmatmul.mubr.f32.gmra.mrb[0].mxu0 %v823
      %v1032 = vpop.f32.mrb[0].mxu0
      %v1033 = vadd.f32 %v712, %v1032
      %v1034 = vpop.f32.mrb[0].mxu0
      %1035 = vmatprep.mubr.f32.mxu0 0.0
      %1036 = vmatmul.mubr.f32.gmra.mrb[0].mxu0 %v826
      %v1037 = vpop.f32.mrb[0].mxu0
      %v1038 = vadd.f32 %v717, %v1037
      %v1039 = vpop.f32.mrb[0].mxu0
      %1040 = vmatprep.mubr.f32.mxu0 0.0
      %1041 = vmatmul.mubr.f32.gmra.mrb[0].mxu0 %v829
      %v1042 = vpop.f32.mrb[0].mxu0
      %v1043 = vadd.f32 %v722, %v1042
      %v1044 = vpop.f32.mrb[0].mxu0
      %1045 = vmatprep.mubr.f32.mxu0 0.0
      %1046 = vmatmul.mubr.f32.gmra.mrb[0].mxu0 %v832
      %v1047 = vpop.f32.mrb[0].mxu0
      %v1048 = vadd.f32 %v727, %v1047
      %v1049 = vpop.f32.mrb[0].mxu0
      %1050 = vmatprep.mubr.f32.mxu0 0.0
      %1051 = vmatmul.mubr.f32.gmra.mrb[0].mxu0 %v835
      %v1052 = vpop.f32.mrb[0].mxu0
      %v1053 = vadd.f32 %v732, %v1052
      %v1054 = vpop.f32.mrb[0].mxu0
      %1055 = vmatprep.mubr.f32.mxu0 0.0
      %1056 = vmatmul.mubr.f32.gmra.mrb[0].mxu0 %v838
      %v1057 = vpop.f32.mrb[0].mxu0
      %v1058 = vadd.f32 %v737, %v1057
      %v1059 = vpop.f32.mrb[0].mxu0
      %1060 = vmatprep.mubr.f32.mxu0 0.0
      %1061 = vmatmul.mubr.f32.gmra.mrb[0].mxu0 %v841
      %v1062 = vpop.f32.mrb[0].mxu0
      %v1063 = vadd.f32 %v742, %v1062
      %v1064 = vpop.f32.mrb[0].mxu0
      %1065 = vmatprep.mubr.f32.mxu0 0.0
      %1066 = vmatmul.mubr.f32.gmra.mrb[0].mxu0 %v844
      %v1067 = vpop.f32.mrb[0].mxu0
      %v1068 = vadd.f32 %v747, %v1067
      %v1069 = vpop.f32.mrb[0].mxu0
      %1070 = vdwg.mxu0
      %v1071 = vld [vmem:[%s4] sm:$0x1]
      %v1073 = vlaneseq
      %v1074 = vshrl.u32 %v1073, 7
      %v1075 = vsub.s32 0, %v1074
      %v1076 = vrot.slane %v1071, %v1075
      %v1078 = vadd.f32 %v913, %v1076
      %v1079 = vadd.f32 %v918, %v1076
      %v1080 = vadd.f32 %v923, %v1076
      %v1081 = vadd.f32 %v928, %v1076
      %v1082 = vadd.f32 %v933, %v1076
      %v1083 = vadd.f32 %v938, %v1076
      %v1084 = vadd.f32 %v943, %v1076
      %v1085 = vadd.f32 %v948, %v1076
      %v1086 = vadd.f32 %v953, %v1076
      %v1087 = vadd.f32 %v958, %v1076
      %v1088 = vadd.f32 %v963, %v1076
      %v1089 = vadd.f32 %v968, %v1076
      %v1090 = vadd.f32 %v973, %v1076
      %v1091 = vadd.f32 %v978, %v1076
      %v1092 = vadd.f32 %v983, %v1076
      %v1093 = vadd.f32 %v988, %v1076
      %v1094 = vadd.f32 %v993, %v1076
      %v1095 = vadd.f32 %v998, %v1076
      %v1096 = vadd.f32 %v1003, %v1076
      %v1097 = vadd.f32 %v1008, %v1076
      %v1098 = vadd.f32 %v1013, %v1076
      %v1099 = vadd.f32 %v1018, %v1076
      %v1100 = vadd.f32 %v1023, %v1076
      %v1101 = vadd.f32 %v1028, %v1076
      %v1102 = vadd.f32 %v1033, %v1076
      %v1103 = vadd.f32 %v1038, %v1076
      %v1104 = vadd.f32 %v1043, %v1076
      %v1105 = vadd.f32 %v1048, %v1076
      %v1106 = vadd.f32 %v1053, %v1076
      %v1107 = vadd.f32 %v1058, %v1076
      %v1108 = vadd.f32 %v1063, %v1076
      %v1109 = vadd.f32 %v1068, %v1076
      %v1110 = vmax.f32 %v1078, 0.0
      %v1111 = vmax.f32 %v1079, 0.0
      %v1112 = vmax.f32 %v1080, 0.0
      %v1113 = vmax.f32 %v1081, 0.0
      %v1114 = vmax.f32 %v1082, 0.0
      %v1115 = vmax.f32 %v1083, 0.0
      %v1116 = vmax.f32 %v1084, 0.0
      %v1117 = vmax.f32 %v1085, 0.0
      %v1118 = vmax.f32 %v1086, 0.0
      %v1119 = vmax.f32 %v1087, 0.0
      %v1120 = vmax.f32 %v1088, 0.0
      %v1121 = vmax.f32 %v1089, 0.0
      %v1122 = vmax.f32 %v1090, 0.0
      %v1123 = vmax.f32 %v1091, 0.0
      %v1124 = vmax.f32 %v1092, 0.0
      %v1125 = vmax.f32 %v1093, 0.0
      %v1126 = vmax.f32 %v1094, 0.0
      %v1127 = vmax.f32 %v1095, 0.0
      %v1128 = vmax.f32 %v1096, 0.0
      %v1129 = vmax.f32 %v1097, 0.0
      %v1130 = vmax.f32 %v1098, 0.0
      %v1131 = vmax.f32 %v1099, 0.0
      %v1132 = vmax.f32 %v1100, 0.0
      %v1133 = vmax.f32 %v1101, 0.0
      %v1134 = vmax.f32 %v1102, 0.0
      %v1135 = vmax.f32 %v1103, 0.0
      %v1136 = vmax.f32 %v1104, 0.0
      %v1137 = vmax.f32 %v1105, 0.0
      %v1138 = vmax.f32 %v1106, 0.0
      %v1139 = vmax.f32 %v1107, 0.0
      %v1140 = vmax.f32 %v1108, 0.0
      %v1141 = vmax.f32 %v1109, 0.0
      %v1142 = vld [vmem:[%s5] sm:$0xff]
      %v1143 = vld [vmem:[%s5 + $0x8] sm:$0xff]
      %v1144 = vld [vmem:[%s5 + $0x10] sm:$0xff]
      %v1145 = vld [vmem:[%s5 + $0x18] sm:$0xff]
      %v1146 = vld [vmem:[%s5 + $0x20] sm:$0xff]
      %v1147 = vld [vmem:[%s5 + $0x28] sm:$0xff]
      %v1148 = vld [vmem:[%s5 + $0x30] sm:$0xff]
      %v1149 = vld [vmem:[%s5 + $0x38] sm:$0xff]
      %v1150 = vld [vmem:[%s5 + $0x40] sm:$0xff]
      %v1151 = vld [vmem:[%s5 + $0x48] sm:$0xff]
      %v1152 = vld [vmem:[%s5 + $0x50] sm:$0xff]
      %v1153 = vld [vmem:[%s5 + $0x58] sm:$0xff]
      %v1154 = vld [vmem:[%s5 + $0x60] sm:$0xff]
      %v1155 = vld [vmem:[%s5 + $0x68] sm:$0xff]
      %v1156 = vld [vmem:[%s5 + $0x70] sm:$0xff]
      %v1157 = vld [vmem:[%s5 + $0x78] sm:$0xff]
      %v1158 = vld [vmem:[%s6] sm:$0x1]
      %v1160 = vlaneseq
      %v1161 = vshrl.u32 %v1160, 7
      %v1162 = vsub.s32 0, %v1161
      %v1163 = vrot.slane %v1158, %v1162
      %1165 = vmatprep.subr.mxu0 0.0
      %1166 = vmatpush1.msra.mxu0 %v1142
      %1167 = vmatprep.subr.mxu0 0.0
      %1168 = vmatpush1.msra.mxu0 %v1143
      %1169 = vmatprep.subr.mxu0 0.0
      %1170 = vmatpush1.msra.mxu0 %v1144
      %1171 = vmatprep.subr.mxu0 0.0
      %1172 = vmatpush1.msra.mxu0 %v1145
      %1173 = vmatprep.subr.mxu0 0.0
      %1174 = vmatpush1.msra.mxu0 %v1146
      %1175 = vmatprep.subr.mxu0 0.0
      %1176 = vmatpush1.msra.mxu0 %v1147
      %1177 = vmatprep.subr.mxu0 0.0
      %1178 = vmatpush1.msra.mxu0 %v1148
      %1179 = vmatprep.subr.mxu0 0.0
      %1180 = vmatpush1.msra.mxu0 %v1149
      %1181 = vmatprep.subr.mxu0 0.0
      %1182 = vmatpush1.msra.mxu0 %v1150
      %1183 = vmatprep.subr.mxu0 0.0
      %1184 = vmatpush1.msra.mxu0 %v1151
      %1185 = vmatprep.subr.mxu0 0.0
      %1186 = vmatpush1.msra.mxu0 %v1152
      %1187 = vmatprep.subr.mxu0 0.0
      %1188 = vmatpush1.msra.mxu0 %v1153
      %1189 = vmatprep.subr.mxu0 0.0
      %1190 = vmatpush1.msra.mxu0 %v1154
      %1191 = vmatprep.subr.mxu0 0.0
      %1192 = vmatpush1.msra.mxu0 %v1155
      %1193 = vmatprep.subr.mxu0 0.0
      %1194 = vmatpush1.msra.mxu0 %v1156
      %1195 = vmatprep.subr.mxu0 0.0
      %1196 = vmatpush1.msra.mxu0 %v1157
      %1197 = vmatprep.subr.mxu0 0.0
      %1198 = vmatpush1.msra.mxu0 0.0
      %1199 = vmatprep.subr.mxu0 0.0
      %1200 = vmatpush1.msra.mxu0 0.0
      %1201 = vmatprep.subr.mxu0 0.0
      %1202 = vmatpush1.msra.mxu0 0.0
      %1203 = vmatprep.subr.mxu0 0.0
      %1204 = vmatpush1.msra.mxu0 0.0
      %1205 = vmatprep.subr.mxu0 0.0
      %1206 = vmatpush1.msra.mxu0 0.0
      %1207 = vmatprep.subr.mxu0 0.0
      %1208 = vmatpush1.msra.mxu0 0.0
      %1209 = vmatprep.subr.mxu0 0.0
      %1210 = vmatpush1.msra.mxu0 0.0
      %1211 = vmatprep.subr.mxu0 0.0
      %1212 = vmatpush1.msra.mxu0 0.0
      %1213 = vmatprep.subr.mxu0 0.0
      %1214 = vmatpush1.msra.mxu0 0.0
      %1215 = vmatprep.subr.mxu0 0.0
      %1216 = vmatpush1.msra.mxu0 0.0
      %1217 = vmatprep.subr.mxu0 0.0
      %1218 = vmatpush1.msra.mxu0 0.0
      %1219 = vmatprep.subr.mxu0 0.0
      %1220 = vmatpush1.msra.mxu0 0.0
      %1221 = vmatprep.subr.mxu0 0.0
      %1222 = vmatpush1.msra.mxu0 0.0
      %1223 = vmatprep.subr.mxu0 0.0
      %1224 = vmatpush1.msra.mxu0 0.0
      %1225 = vmatprep.subr.mxu0 0.0
      %1226 = vmatpush1.msra.mxu0 0.0
      %1227 = vmatprep.subr.mxu0 0.0
      %1228 = vmatpush1.msra.mxu0 0.0
      %1229 = vmatprep.mubr.f32.mxu0 0.0
      %1230 = vmatmul.mubr.f32.gmra.mrb[0].mxu0 %v1110
      %v1231 = vpop.f32.mrb[0].mxu0
      %v1232 = vadd.f32 %v1163, %v1231
      %v1233 = vpop.f32.mrb[0].mxu0
      %1234 = vmatprep.mubr.f32.mxu0 0.0
      %1235 = vmatmul.mubr.f32.gmra.mrb[0].mxu0 %v1111
      %v1236 = vpop.f32.mrb[0].mxu0
      %v1237 = vadd.f32 %v1163, %v1236
      %v1238 = vpop.f32.mrb[0].mxu0
      %1239 = vmatprep.mubr.f32.mxu0 0.0
      %1240 = vmatmul.mubr.f32.gmra.mrb[0].mxu0 %v1112
      %v1241 = vpop.f32.mrb[0].mxu0
      %v1242 = vadd.f32 %v1163, %v1241
      %v1243 = vpop.f32.mrb[0].mxu0
      %1244 = vmatprep.mubr.f32.mxu0 0.0
      %1245 = vmatmul.mubr.f32.gmra.mrb[0].mxu0 %v1113
      %v1246 = vpop.f32.mrb[0].mxu0
      %v1247 = vadd.f32 %v1163, %v1246
      %v1248 = vpop.f32.mrb[0].mxu0
      %1249 = vmatprep.mubr.f32.mxu0 0.0
      %1250 = vmatmul.mubr.f32.gmra.mrb[0].mxu0 %v1114
      %v1251 = vpop.f32.mrb[0].mxu0
      %v1252 = vadd.f32 %v1163, %v1251
      %v1253 = vpop.f32.mrb[0].mxu0
      %1254 = vmatprep.mubr.f32.mxu0 0.0
      %1255 = vmatmul.mubr.f32.gmra.mrb[0].mxu0 %v1115
      %v1256 = vpop.f32.mrb[0].mxu0
      %v1257 = vadd.f32 %v1163, %v1256
      %v1258 = vpop.f32.mrb[0].mxu0
      %1259 = vmatprep.mubr.f32.mxu0 0.0
      %1260 = vmatmul.mubr.f32.gmra.mrb[0].mxu0 %v1116
      %v1261 = vpop.f32.mrb[0].mxu0
      %v1262 = vadd.f32 %v1163, %v1261
      %v1263 = vpop.f32.mrb[0].mxu0
      %1264 = vmatprep.mubr.f32.mxu0 0.0
      %1265 = vmatmul.mubr.f32.gmra.mrb[0].mxu0 %v1117
      %v1266 = vpop.f32.mrb[0].mxu0
      %v1267 = vadd.f32 %v1163, %v1266
      %v1268 = vpop.f32.mrb[0].mxu0
      %1269 = vmatprep.mubr.f32.mxu0 0.0
      %1270 = vmatmul.mubr.f32.gmra.mrb[0].mxu0 %v1118
      %v1271 = vpop.f32.mrb[0].mxu0
      %v1272 = vadd.f32 %v1163, %v1271
      %v1273 = vpop.f32.mrb[0].mxu0
      %1274 = vmatprep.mubr.f32.mxu0 0.0
      %1275 = vmatmul.mubr.f32.gmra.mrb[0].mxu0 %v1119
      %v1276 = vpop.f32.mrb[0].mxu0
      %v1277 = vadd.f32 %v1163, %v1276
      %v1278 = vpop.f32.mrb[0].mxu0
      %1279 = vmatprep.mubr.f32.mxu0 0.0
      %1280 = vmatmul.mubr.f32.gmra.mrb[0].mxu0 %v1120
      %v1281 = vpop.f32.mrb[0].mxu0
      %v1282 = vadd.f32 %v1163, %v1281
      %v1283 = vpop.f32.mrb[0].mxu0
      %1284 = vmatprep.mubr.f32.mxu0 0.0
      %1285 = vmatmul.mubr.f32.gmra.mrb[0].mxu0 %v1121
      %v1286 = vpop.f32.mrb[0].mxu0
      %v1287 = vadd.f32 %v1163, %v1286
      %v1288 = vpop.f32.mrb[0].mxu0
      %1289 = vmatprep.mubr.f32.mxu0 0.0
      %1290 = vmatmul.mubr.f32.gmra.mrb[0].mxu0 %v1122
      %v1291 = vpop.f32.mrb[0].mxu0
      %v1292 = vadd.f32 %v1163, %v1291
      %v1293 = vpop.f32.mrb[0].mxu0
      %1294 = vmatprep.mubr.f32.mxu0 0.0
      %1295 = vmatmul.mubr.f32.gmra.mrb[0].mxu0 %v1123
      %v1296 = vpop.f32.mrb[0].mxu0
      %v1297 = vadd.f32 %v1163, %v1296
      %v1298 = vpop.f32.mrb[0].mxu0
      %1299 = vmatprep.mubr.f32.mxu0 0.0
      %1300 = vmatmul.mubr.f32.gmra.mrb[0].mxu0 %v1124
      %v1301 = vpop.f32.mrb[0].mxu0
      %v1302 = vadd.f32 %v1163, %v1301
      %v1303 = vpop.f32.mrb[0].mxu0
      %1304 = vmatprep.mubr.f32.mxu0 0.0
      %1305 = vmatmul.mubr.f32.gmra.mrb[0].mxu0 %v1125
      %v1306 = vpop.f32.mrb[0].mxu0
      %v1307 = vadd.f32 %v1163, %v1306
      %v1308 = vpop.f32.mrb[0].mxu0
      %1309 = vmatprep.mubr.f32.mxu0 0.0
      %1310 = vmatmul.mubr.f32.gmra.mrb[0].mxu0 %v1126
      %v1311 = vpop.f32.mrb[0].mxu0
      %v1312 = vadd.f32 %v1163, %v1311
      %v1313 = vpop.f32.mrb[0].mxu0
      %1314 = vmatprep.mubr.f32.mxu0 0.0
      %1315 = vmatmul.mubr.f32.gmra.mrb[0].mxu0 %v1127
      %v1316 = vpop.f32.mrb[0].mxu0
      %v1317 = vadd.f32 %v1163, %v1316
      %v1318 = vpop.f32.mrb[0].mxu0
      %1319 = vmatprep.mubr.f32.mxu0 0.0
      %1320 = vmatmul.mubr.f32.gmra.mrb[0].mxu0 %v1128
      %v1321 = vpop.f32.mrb[0].mxu0
      %v1322 = vadd.f32 %v1163, %v1321
      %v1323 = vpop.f32.mrb[0].mxu0
      %1324 = vmatprep.mubr.f32.mxu0 0.0
      %1325 = vmatmul.mubr.f32.gmra.mrb[0].mxu0 %v1129
      %v1326 = vpop.f32.mrb[0].mxu0
      %v1327 = vadd.f32 %v1163, %v1326
      %v1328 = vpop.f32.mrb[0].mxu0
      %1329 = vmatprep.mubr.f32.mxu0 0.0
      %1330 = vmatmul.mubr.f32.gmra.mrb[0].mxu0 %v1130
      %v1331 = vpop.f32.mrb[0].mxu0
      %v1332 = vadd.f32 %v1163, %v1331
      %v1333 = vpop.f32.mrb[0].mxu0
      %1334 = vmatprep.mubr.f32.mxu0 0.0
      %1335 = vmatmul.mubr.f32.gmra.mrb[0].mxu0 %v1131
      %v1336 = vpop.f32.mrb[0].mxu0
      %v1337 = vadd.f32 %v1163, %v1336
      %v1338 = vpop.f32.mrb[0].mxu0
      %1339 = vmatprep.mubr.f32.mxu0 0.0
      %1340 = vmatmul.mubr.f32.gmra.mrb[0].mxu0 %v1132
      %v1341 = vpop.f32.mrb[0].mxu0
      %v1342 = vadd.f32 %v1163, %v1341
      %v1343 = vpop.f32.mrb[0].mxu0
      %1344 = vmatprep.mubr.f32.mxu0 0.0
      %1345 = vmatmul.mubr.f32.gmra.mrb[0].mxu0 %v1133
      %v1346 = vpop.f32.mrb[0].mxu0
      %v1347 = vadd.f32 %v1163, %v1346
      %v1348 = vpop.f32.mrb[0].mxu0
      %1349 = vmatprep.mubr.f32.mxu0 0.0
      %1350 = vmatmul.mubr.f32.gmra.mrb[0].mxu0 %v1134
      %v1351 = vpop.f32.mrb[0].mxu0
      %v1352 = vadd.f32 %v1163, %v1351
      %v1353 = vpop.f32.mrb[0].mxu0
      %1354 = vmatprep.mubr.f32.mxu0 0.0
      %1355 = vmatmul.mubr.f32.gmra.mrb[0].mxu0 %v1135
      %v1356 = vpop.f32.mrb[0].mxu0
      %v1357 = vadd.f32 %v1163, %v1356
      %v1358 = vpop.f32.mrb[0].mxu0
      %1359 = vmatprep.mubr.f32.mxu0 0.0
      %1360 = vmatmul.mubr.f32.gmra.mrb[0].mxu0 %v1136
      %v1361 = vpop.f32.mrb[0].mxu0
      %v1362 = vadd.f32 %v1163, %v1361
      %v1363 = vpop.f32.mrb[0].mxu0
      %1364 = vmatprep.mubr.f32.mxu0 0.0
      %1365 = vmatmul.mubr.f32.gmra.mrb[0].mxu0 %v1137
      %v1366 = vpop.f32.mrb[0].mxu0
      %v1367 = vadd.f32 %v1163, %v1366
      %v1368 = vpop.f32.mrb[0].mxu0
      %1369 = vmatprep.mubr.f32.mxu0 0.0
      %1370 = vmatmul.mubr.f32.gmra.mrb[0].mxu0 %v1138
      %v1371 = vpop.f32.mrb[0].mxu0
      %v1372 = vadd.f32 %v1163, %v1371
      %v1373 = vpop.f32.mrb[0].mxu0
      %1374 = vmatprep.mubr.f32.mxu0 0.0
      %1375 = vmatmul.mubr.f32.gmra.mrb[0].mxu0 %v1139
      %v1376 = vpop.f32.mrb[0].mxu0
      %v1377 = vadd.f32 %v1163, %v1376
      %v1378 = vpop.f32.mrb[0].mxu0
      %1379 = vmatprep.mubr.f32.mxu0 0.0
      %1380 = vmatmul.mubr.f32.gmra.mrb[0].mxu0 %v1140
      %v1381 = vpop.f32.mrb[0].mxu0
      %v1382 = vadd.f32 %v1163, %v1381
      %v1383 = vpop.f32.mrb[0].mxu0
      %1384 = vmatprep.mubr.f32.mxu0 0.0
      %1385 = vmatmul.mubr.f32.gmra.mrb[0].mxu0 %v1141
      %v1386 = vpop.f32.mrb[0].mxu0
      %v1387 = vadd.f32 %v1163, %v1386
      %v1388 = vpop.f32.mrb[0].mxu0
      %1389 = vdwg.mxu0
      %v1390 = vmax.f32 %v1232, 0.0
      %v1391 = vmax.f32 %v1237, 0.0
      %v1392 = vmax.f32 %v1242, 0.0
      %v1393 = vmax.f32 %v1247, 0.0
      %v1394 = vmax.f32 %v1252, 0.0
      %v1395 = vmax.f32 %v1257, 0.0
      %v1396 = vmax.f32 %v1262, 0.0
      %v1397 = vmax.f32 %v1267, 0.0
      %v1398 = vmax.f32 %v1272, 0.0
      %v1399 = vmax.f32 %v1277, 0.0
      %v1400 = vmax.f32 %v1282, 0.0
      %v1401 = vmax.f32 %v1287, 0.0
      %v1402 = vmax.f32 %v1292, 0.0
      %v1403 = vmax.f32 %v1297, 0.0
      %v1404 = vmax.f32 %v1302, 0.0
      %v1405 = vmax.f32 %v1307, 0.0
      %v1406 = vmax.f32 %v1312, 0.0
      %v1407 = vmax.f32 %v1317, 0.0
      %v1408 = vmax.f32 %v1322, 0.0
      %v1409 = vmax.f32 %v1327, 0.0
      %v1410 = vmax.f32 %v1332, 0.0
      %v1411 = vmax.f32 %v1337, 0.0
      %v1412 = vmax.f32 %v1342, 0.0
      %v1413 = vmax.f32 %v1347, 0.0
      %v1414 = vmax.f32 %v1352, 0.0
      %v1415 = vmax.f32 %v1357, 0.0
      %v1416 = vmax.f32 %v1362, 0.0
      %v1417 = vmax.f32 %v1367, 0.0
      %v1418 = vmax.f32 %v1372, 0.0
      %v1419 = vmax.f32 %v1377, 0.0
      %v1420 = vmax.f32 %v1382, 0.0
      %v1421 = vmax.f32 %v1387, 0.0
      %v1422 = vld [vmem:[%s7] sm:$0xff]
      %v1423 = vld [vmem:[%s7 + $0x8] sm:$0xff]
      %v1424 = vld [vmem:[%s7 + $0x10] sm:$0xff]
      %v1425 = vld [vmem:[%s7 + $0x18] sm:$0xff]
      %v1426 = vld [vmem:[%s7 + $0x20] sm:$0xff]
      %v1427 = vld [vmem:[%s7 + $0x28] sm:$0xff]
      %v1428 = vld [vmem:[%s7 + $0x30] sm:$0xff]
      %v1429 = vld [vmem:[%s7 + $0x38] sm:$0xff]
      %v1430 = vld [vmem:[%s7 + $0x40] sm:$0xff]
      %v1431 = vld [vmem:[%s7 + $0x48] sm:$0xff]
      %v1432 = vld [vmem:[%s7 + $0x50] sm:$0xff]
      %v1433 = vld [vmem:[%s7 + $0x58] sm:$0xff]
      %v1434 = vld [vmem:[%s7 + $0x60] sm:$0xff]
      %v1435 = vld [vmem:[%s7 + $0x68] sm:$0xff]
      %v1436 = vld [vmem:[%s7 + $0x70] sm:$0xff]
      %v1437 = vld [vmem:[%s7 + $0x78] sm:$0xff]
      %v1438 = vld [vmem:[%s8] sm:$0x1]
      %v1440 = vlaneseq
      %v1441 = vshrl.u32 %v1440, 7
      %v1442 = vsub.s32 0, %v1441
      %v1443 = vrot.slane %v1438, %v1442
      %1445 = vmatprep.subr.mxu0 0.0
      %1446 = vmatpush1.msra.mxu0 %v1422
      %1447 = vmatprep.subr.mxu0 0.0
      %1448 = vmatpush1.msra.mxu0 %v1423
      %1449 = vmatprep.subr.mxu0 0.0
      %1450 = vmatpush1.msra.mxu0 %v1424
      %1451 = vmatprep.subr.mxu0 0.0
      %1452 = vmatpush1.msra.mxu0 %v1425
      %1453 = vmatprep.subr.mxu0 0.0
      %1454 = vmatpush1.msra.mxu0 %v1426
      %1455 = vmatprep.subr.mxu0 0.0
      %1456 = vmatpush1.msra.mxu0 %v1427
      %1457 = vmatprep.subr.mxu0 0.0
      %1458 = vmatpush1.msra.mxu0 %v1428
      %1459 = vmatprep.subr.mxu0 0.0
      %1460 = vmatpush1.msra.mxu0 %v1429
      %1461 = vmatprep.subr.mxu0 0.0
      %1462 = vmatpush1.msra.mxu0 %v1430
      %1463 = vmatprep.subr.mxu0 0.0
      %1464 = vmatpush1.msra.mxu0 %v1431
      %1465 = vmatprep.subr.mxu0 0.0
      %1466 = vmatpush1.msra.mxu0 %v1432
      %1467 = vmatprep.subr.mxu0 0.0
      %1468 = vmatpush1.msra.mxu0 %v1433
      %1469 = vmatprep.subr.mxu0 0.0
      %1470 = vmatpush1.msra.mxu0 %v1434
      %1471 = vmatprep.subr.mxu0 0.0
      %1472 = vmatpush1.msra.mxu0 %v1435
      %1473 = vmatprep.subr.mxu0 0.0
      %1474 = vmatpush1.msra.mxu0 %v1436
      %1475 = vmatprep.subr.mxu0 0.0
      %1476 = vmatpush1.msra.mxu0 %v1437
      %1477 = vmatprep.subr.mxu0 0.0
      %1478 = vmatpush1.msra.mxu0 0.0
      %1479 = vmatprep.subr.mxu0 0.0
      %1480 = vmatpush1.msra.mxu0 0.0
      %1481 = vmatprep.subr.mxu0 0.0
      %1482 = vmatpush1.msra.mxu0 0.0
      %1483 = vmatprep.subr.mxu0 0.0
      %1484 = vmatpush1.msra.mxu0 0.0
      %1485 = vmatprep.subr.mxu0 0.0
      %1486 = vmatpush1.msra.mxu0 0.0
      %1487 = vmatprep.subr.mxu0 0.0
      %1488 = vmatpush1.msra.mxu0 0.0
      %1489 = vmatprep.subr.mxu0 0.0
      %1490 = vmatpush1.msra.mxu0 0.0
      %1491 = vmatprep.subr.mxu0 0.0
      %1492 = vmatpush1.msra.mxu0 0.0
      %1493 = vmatprep.subr.mxu0 0.0
      %1494 = vmatpush1.msra.mxu0 0.0
      %1495 = vmatprep.subr.mxu0 0.0
      %1496 = vmatpush1.msra.mxu0 0.0
      %1497 = vmatprep.subr.mxu0 0.0
      %1498 = vmatpush1.msra.mxu0 0.0
      %1499 = vmatprep.subr.mxu0 0.0
      %1500 = vmatpush1.msra.mxu0 0.0
      %1501 = vmatprep.subr.mxu0 0.0
      %1502 = vmatpush1.msra.mxu0 0.0
      %1503 = vmatprep.subr.mxu0 0.0
      %1504 = vmatpush1.msra.mxu0 0.0
      %1505 = vmatprep.subr.mxu0 0.0
      %1506 = vmatpush1.msra.mxu0 0.0
      %1507 = vmatprep.subr.mxu0 0.0
      %1508 = vmatpush1.msra.mxu0 0.0
      %1509 = vmatprep.mubr.f32.mxu0 0.0
      %1510 = vmatmul.mubr.f32.gmra.mrb[0].mxu0 %v1390
      %v1511 = vpop.f32.mrb[0].mxu0
      %v1512 = vadd.f32 %v1443, %v1511
      %v1513 = vpop.f32.mrb[0].mxu0
      %1514 = vmatprep.mubr.f32.mxu0 0.0
      %1515 = vmatmul.mubr.f32.gmra.mrb[0].mxu0 %v1391
      %v1516 = vpop.f32.mrb[0].mxu0
      %v1517 = vadd.f32 %v1443, %v1516
      %v1518 = vpop.f32.mrb[0].mxu0
      %1519 = vmatprep.mubr.f32.mxu0 0.0
      %1520 = vmatmul.mubr.f32.gmra.mrb[0].mxu0 %v1392
      %v1521 = vpop.f32.mrb[0].mxu0
      %v1522 = vadd.f32 %v1443, %v1521
      %v1523 = vpop.f32.mrb[0].mxu0
      %1524 = vmatprep.mubr.f32.mxu0 0.0
      %1525 = vmatmul.mubr.f32.gmra.mrb[0].mxu0 %v1393
      %v1526 = vpop.f32.mrb[0].mxu0
      %v1527 = vadd.f32 %v1443, %v1526
      %v1528 = vpop.f32.mrb[0].mxu0
      %1529 = vmatprep.mubr.f32.mxu0 0.0
      %1530 = vmatmul.mubr.f32.gmra.mrb[0].mxu0 %v1394
      %v1531 = vpop.f32.mrb[0].mxu0
      %v1532 = vadd.f32 %v1443, %v1531
      %v1533 = vpop.f32.mrb[0].mxu0
      %1534 = vmatprep.mubr.f32.mxu0 0.0
      %1535 = vmatmul.mubr.f32.gmra.mrb[0].mxu0 %v1395
      %v1536 = vpop.f32.mrb[0].mxu0
      %v1537 = vadd.f32 %v1443, %v1536
      %v1538 = vpop.f32.mrb[0].mxu0
      %1539 = vmatprep.mubr.f32.mxu0 0.0
      %1540 = vmatmul.mubr.f32.gmra.mrb[0].mxu0 %v1396
      %v1541 = vpop.f32.mrb[0].mxu0
      %v1542 = vadd.f32 %v1443, %v1541
      %v1543 = vpop.f32.mrb[0].mxu0
      %1544 = vmatprep.mubr.f32.mxu0 0.0
      %1545 = vmatmul.mubr.f32.gmra.mrb[0].mxu0 %v1397
      %v1546 = vpop.f32.mrb[0].mxu0
      %v1547 = vadd.f32 %v1443, %v1546
      %v1548 = vpop.f32.mrb[0].mxu0
      %1549 = vmatprep.mubr.f32.mxu0 0.0
      %1550 = vmatmul.mubr.f32.gmra.mrb[0].mxu0 %v1398
      %v1551 = vpop.f32.mrb[0].mxu0
      %v1552 = vadd.f32 %v1443, %v1551
      %v1553 = vpop.f32.mrb[0].mxu0
      %1554 = vmatprep.mubr.f32.mxu0 0.0
      %1555 = vmatmul.mubr.f32.gmra.mrb[0].mxu0 %v1399
      %v1556 = vpop.f32.mrb[0].mxu0
      %v1557 = vadd.f32 %v1443, %v1556
      %v1558 = vpop.f32.mrb[0].mxu0
      %1559 = vmatprep.mubr.f32.mxu0 0.0
      %1560 = vmatmul.mubr.f32.gmra.mrb[0].mxu0 %v1400
      %v1561 = vpop.f32.mrb[0].mxu0
      %v1562 = vadd.f32 %v1443, %v1561
      %v1563 = vpop.f32.mrb[0].mxu0
      %1564 = vmatprep.mubr.f32.mxu0 0.0
      %1565 = vmatmul.mubr.f32.gmra.mrb[0].mxu0 %v1401
      %v1566 = vpop.f32.mrb[0].mxu0
      %v1567 = vadd.f32 %v1443, %v1566
      %v1568 = vpop.f32.mrb[0].mxu0
      %1569 = vmatprep.mubr.f32.mxu0 0.0
      %1570 = vmatmul.mubr.f32.gmra.mrb[0].mxu0 %v1402
      %v1571 = vpop.f32.mrb[0].mxu0
      %v1572 = vadd.f32 %v1443, %v1571
      %v1573 = vpop.f32.mrb[0].mxu0
      %1574 = vmatprep.mubr.f32.mxu0 0.0
      %1575 = vmatmul.mubr.f32.gmra.mrb[0].mxu0 %v1403
      %v1576 = vpop.f32.mrb[0].mxu0
      %v1577 = vadd.f32 %v1443, %v1576
      %v1578 = vpop.f32.mrb[0].mxu0
      %1579 = vmatprep.mubr.f32.mxu0 0.0
      %1580 = vmatmul.mubr.f32.gmra.mrb[0].mxu0 %v1404
      %v1581 = vpop.f32.mrb[0].mxu0
      %v1582 = vadd.f32 %v1443, %v1581
      %v1583 = vpop.f32.mrb[0].mxu0
      %1584 = vmatprep.mubr.f32.mxu0 0.0
      %1585 = vmatmul.mubr.f32.gmra.mrb[0].mxu0 %v1405
      %v1586 = vpop.f32.mrb[0].mxu0
      %v1587 = vadd.f32 %v1443, %v1586
      %v1588 = vpop.f32.mrb[0].mxu0
      %1589 = vmatprep.mubr.f32.mxu0 0.0
      %1590 = vmatmul.mubr.f32.gmra.mrb[0].mxu0 %v1406
      %v1591 = vpop.f32.mrb[0].mxu0
      %v1592 = vadd.f32 %v1443, %v1591
      %v1593 = vpop.f32.mrb[0].mxu0
      %1594 = vmatprep.mubr.f32.mxu0 0.0
      %1595 = vmatmul.mubr.f32.gmra.mrb[0].mxu0 %v1407
      %v1596 = vpop.f32.mrb[0].mxu0
      %v1597 = vadd.f32 %v1443, %v1596
      %v1598 = vpop.f32.mrb[0].mxu0
      %1599 = vmatprep.mubr.f32.mxu0 0.0
      %1600 = vmatmul.mubr.f32.gmra.mrb[0].mxu0 %v1408
      %v1601 = vpop.f32.mrb[0].mxu0
      %v1602 = vadd.f32 %v1443, %v1601
      %v1603 = vpop.f32.mrb[0].mxu0
      %1604 = vmatprep.mubr.f32.mxu0 0.0
      %1605 = vmatmul.mubr.f32.gmra.mrb[0].mxu0 %v1409
      %v1606 = vpop.f32.mrb[0].mxu0
      %v1607 = vadd.f32 %v1443, %v1606
      %v1608 = vpop.f32.mrb[0].mxu0
      %1609 = vmatprep.mubr.f32.mxu0 0.0
      %1610 = vmatmul.mubr.f32.gmra.mrb[0].mxu0 %v1410
      %v1611 = vpop.f32.mrb[0].mxu0
      %v1612 = vadd.f32 %v1443, %v1611
      %v1613 = vpop.f32.mrb[0].mxu0
      %1614 = vmatprep.mubr.f32.mxu0 0.0
      %1615 = vmatmul.mubr.f32.gmra.mrb[0].mxu0 %v1411
      %v1616 = vpop.f32.mrb[0].mxu0
      %v1617 = vadd.f32 %v1443, %v1616
      %v1618 = vpop.f32.mrb[0].mxu0
      %1619 = vmatprep.mubr.f32.mxu0 0.0
      %1620 = vmatmul.mubr.f32.gmra.mrb[0].mxu0 %v1412
      %v1621 = vpop.f32.mrb[0].mxu0
      %v1622 = vadd.f32 %v1443, %v1621
      %v1623 = vpop.f32.mrb[0].mxu0
      %1624 = vmatprep.mubr.f32.mxu0 0.0
      %1625 = vmatmul.mubr.f32.gmra.mrb[0].mxu0 %v1413
      %v1626 = vpop.f32.mrb[0].mxu0
      %v1627 = vadd.f32 %v1443, %v1626
      %v1628 = vpop.f32.mrb[0].mxu0
      %1629 = vmatprep.mubr.f32.mxu0 0.0
      %1630 = vmatmul.mubr.f32.gmra.mrb[0].mxu0 %v1414
      %v1631 = vpop.f32.mrb[0].mxu0
      %v1632 = vadd.f32 %v1443, %v1631
      %v1633 = vpop.f32.mrb[0].mxu0
      %1634 = vmatprep.mubr.f32.mxu0 0.0
      %1635 = vmatmul.mubr.f32.gmra.mrb[0].mxu0 %v1415
      %v1636 = vpop.f32.mrb[0].mxu0
      %v1637 = vadd.f32 %v1443, %v1636
      %v1638 = vpop.f32.mrb[0].mxu0
      %1639 = vmatprep.mubr.f32.mxu0 0.0
      %1640 = vmatmul.mubr.f32.gmra.mrb[0].mxu0 %v1416
      %v1641 = vpop.f32.mrb[0].mxu0
      %v1642 = vadd.f32 %v1443, %v1641
      %v1643 = vpop.f32.mrb[0].mxu0
      %1644 = vmatprep.mubr.f32.mxu0 0.0
      %1645 = vmatmul.mubr.f32.gmra.mrb[0].mxu0 %v1417
      %v1646 = vpop.f32.mrb[0].mxu0
      %v1647 = vadd.f32 %v1443, %v1646
      %v1648 = vpop.f32.mrb[0].mxu0
      %1649 = vmatprep.mubr.f32.mxu0 0.0
      %1650 = vmatmul.mubr.f32.gmra.mrb[0].mxu0 %v1418
      %v1651 = vpop.f32.mrb[0].mxu0
      %v1652 = vadd.f32 %v1443, %v1651
      %v1653 = vpop.f32.mrb[0].mxu0
      %1654 = vmatprep.mubr.f32.mxu0 0.0
      %1655 = vmatmul.mubr.f32.gmra.mrb[0].mxu0 %v1419
      %v1656 = vpop.f32.mrb[0].mxu0
      %v1657 = vadd.f32 %v1443, %v1656
      %v1658 = vpop.f32.mrb[0].mxu0
      %1659 = vmatprep.mubr.f32.mxu0 0.0
      %1660 = vmatmul.mubr.f32.gmra.mrb[0].mxu0 %v1420
      %v1661 = vpop.f32.mrb[0].mxu0
      %v1662 = vadd.f32 %v1443, %v1661
      %v1663 = vpop.f32.mrb[0].mxu0
      %1664 = vmatprep.mubr.f32.mxu0 0.0
      %1665 = vmatmul.mubr.f32.gmra.mrb[0].mxu0 %v1421
      %v1666 = vpop.f32.mrb[0].mxu0
      %v1667 = vadd.f32 %v1443, %v1666
      %v1668 = vpop.f32.mrb[0].mxu0
      %1669 = vdwg.mxu0
      %1670 = vst [vmem:[%s356] sm:$0xff] %v1512
      %1671 = vst [vmem:[%s356 + $0x8] sm:$0xff] %v1517
      %1672 = vst [vmem:[%s356 + $0x10] sm:$0xff] %v1522
      %1673 = vst [vmem:[%s356 + $0x18] sm:$0xff] %v1527
      %1674 = vst [vmem:[%s356 + $0x20] sm:$0xff] %v1532
      %1675 = vst [vmem:[%s356 + $0x28] sm:$0xff] %v1537
      %1676 = vst [vmem:[%s356 + $0x30] sm:$0xff] %v1542
      %1677 = vst [vmem:[%s356 + $0x38] sm:$0xff] %v1547
      %1678 = vst [vmem:[%s356 + $0x40] sm:$0xff] %v1552
      %1679 = vst [vmem:[%s356 + $0x48] sm:$0xff] %v1557
      %1680 = vst [vmem:[%s356 + $0x50] sm:$0xff] %v1562
      %1681 = vst [vmem:[%s356 + $0x58] sm:$0xff] %v1567
      %1682 = vst [vmem:[%s356 + $0x60] sm:$0xff] %v1572
      %1683 = vst [vmem:[%s356 + $0x68] sm:$0xff] %v1577
      %1684 = vst [vmem:[%s356 + $0x70] sm:$0xff] %v1582
      %1685 = vst [vmem:[%s356 + $0x78] sm:$0xff] %v1587
      %1686 = vst [vmem:[%s356 + $0x80] sm:$0xff] %v1592
      %1687 = vst [vmem:[%s356 + $0x88] sm:$0xff] %v1597
      %1688 = vst [vmem:[%s356 + $0x90] sm:$0xff] %v1602
      %1689 = vst [vmem:[%s356 + $0x98] sm:$0xff] %v1607
      %1690 = vst [vmem:[%s356 + $0xa0] sm:$0xff] %v1612
      %1691 = vst [vmem:[%s356 + $0xa8] sm:$0xff] %v1617
      %1692 = vst [vmem:[%s356 + $0xb0] sm:$0xff] %v1622
      %1693 = vst [vmem:[%s356 + $0xb8] sm:$0xff] %v1627
      %1694 = vst [vmem:[%s356 + $0xc0] sm:$0xff] %v1632
      %1695 = vst [vmem:[%s356 + $0xc8] sm:$0xff] %v1637
      %1696 = vst [vmem:[%s356 + $0xd0] sm:$0xff] %v1642
      %1697 = vst [vmem:[%s356 + $0xd8] sm:$0xff] %v1647
      %1698 = vst [vmem:[%s356 + $0xe0] sm:$0xff] %v1652
      %1699 = vst [vmem:[%s356 + $0xe8] sm:$0xff] %v1657
      %1700 = vst [vmem:[%s356 + $0xf0] sm:$0xff] %v1662
      %1701 = vst [vmem:[%s356 + $0xf8] sm:$0xff] %v1667
      %s1702 = smul.u32 32, %s20
      %p1703 = scmp.lt.s32.totalorder %s1702, 63
      %s1704 = scalar_select %p1703, %s1702, 63
      %s1705 = smul.addr %s1704, 8
      %s1706 = scalar_lea.vmem %s9, %s1705
      // Predicated region
      $region57: #{rot_feat_fuser_forward.1} parent=55 // pred_check
        %p1707 = pneg %p237
      $region58: #{rot_feat_fuser_forward.1} parent=55 // pred_check_branch
        %1709 = sbr.rel (%p1707) target = $region60
      $region59: #{rot_feat_fuser_forward.1} parent=55 // pred_region
        %s1710 = smul.u32 32, %s20
      $region60: #{rot_feat_fuser_forward.1} parent=55 // pred_fallthru
        _
    $region56: #{rot_feat_fuser_forward.1} parent=5 // pred_fallthru
      _
    %p1711 = scmp.le.s32.totalorder 2, %s15
    // Predicated region
    $region61: #{rot_feat_fuser_forward.1} parent=5 // pred_check
      %p1712 = pneg %p1711
    $region62: #{rot_feat_fuser_forward.1} parent=5 // pred_check_branch
      %1714 = sbr.rel (%p1712) target = $region64
    $region63: #{rot_feat_fuser_forward.1} parent=5 // pred_region
      %s1715 = ssub.s32 %s15, 2
      // Predicated region
      $region65: #{rot_feat_fuser_forward.1} parent=63 // pred_check
        %p1716 = pneg %p243
      $region66: #{rot_feat_fuser_forward.1} parent=63 // pred_check_branch
        %1718 = sbr.rel (%p1716) target = $region68
      $region67: #{rot_feat_fuser_forward.1} parent=63 // pred_region
        %s1719 = smul.u32 32, %s21
        %p1720 = scmp.lt.s32.totalorder %s1719, 63
        %s1721 = scalar_select %p1720, %s1719, 63
        %s1722 = smul.addr %s1721, 8
        %s1723 = scalar_lea.vmem %s9, %s1722
      $region68: #{rot_feat_fuser_forward.1} parent=63 // pred_fallthru
        _
    $region64: #{rot_feat_fuser_forward.1} parent=5 // pred_fallthru
      _
  $region6: #{rot_feat_fuser_forward.1} parent=0 // loop_footer
    %s19 = sadd.s32 1, %s15
  $region7: #{rot_feat_fuser_forward.1} parent=0 // loop_footer_branch
    %14 = sbr.rel target = $region3
  $region8: #{rot_feat_fuser_forward.1} parent=0 // loop_exit
    _

</llo_original>
